<compile_context>
chip_gen: v7x
topology: tpu7x:2x2x1
jax: 0.10.0
libtpu: 0.0.40
codegen_flags: <defaults>
</compile_context>

<pallas_src>
import math

import jax
import jax.numpy as jnp
from jax import lax
from jax.experimental import pallas as pl
from jax.experimental.pallas import tpu as pltpu

_LN_EPS = 1e-5
_MASK_FILL = -1000000000.0  # matches masked_fill(mask == 0, -1e9)


def _layernorm(y, g, b):
    mu = jnp.mean(y, axis=-1, keepdims=True)
    var = jnp.mean(jnp.square(y - mu), axis=-1, keepdims=True)
    return (y - mu) * lax.rsqrt(var + _LN_EPS) * g + b


def _make_kernel(tq: int, seq: int, d_model: int):
    """Build the fused TransformerBlock kernel for a given query-tile size."""
    inv_sqrt_d = 1.0 / math.sqrt(d_model)
    single_tile = (tq == seq)  # one query tile per batch element -> fully fused QKV

    def kernel(x_ref, mask_ref,
               g1_ref, be1_ref,
               wqkv_ref, bqkv_ref, wo_ref, bo_ref,
               g2_ref, be2_ref,
               w1_ref, bf1_ref, w2_ref, bf2_ref,
               out_ref, attn_ref):
        d = d_model
        x = x_ref[...]            # (S, D) f32, full sequence for this batch element
        add_mask = mask_ref[...]  # (1, S) f32 additive mask (0 or -1e9)

        # ---------------- LayerNorm 1 over the full sequence (K/V need every row) ----
        xn = _layernorm(x, g1_ref[...], be1_ref[...])
        xn_bf = xn.astype(jnp.bfloat16)

        if single_tile:
            # One wide (D, 3D) MXU op for Q, K, V; f32 accumulate, f32 bias add.
            qkv = jnp.dot(xn_bf, wqkv_ref[...],
                          preferred_element_type=jnp.float32) + bqkv_ref[...]
            q = qkv[:, :d]
            k = qkv[:, d:2 * d]
            v = qkv[:, 2 * d:]
            x_tile = x
        else:
            # Query-tiled path: K/V over the full sequence, Q only for this tile.
            row0 = pl.multiple_of(pl.program_id(1) * tq, tq)
            kv = jnp.dot(xn_bf, wqkv_ref[:, d:],
                         preferred_element_type=jnp.float32) + bqkv_ref[:, d:]
            k = kv[:, :d]
            v = kv[:, d:]
            x_tile = x_ref[pl.ds(row0, tq), :]
            xn_t = _layernorm(x_tile, g1_ref[...], be1_ref[...])
            q = jnp.dot(xn_t.astype(jnp.bfloat16), wqkv_ref[:, :d],
                        preferred_element_type=jnp.float32) + bqkv_ref[:, :d]

        # Fold 1/sqrt(d_model) into q: a (TQ, D) multiply instead of (TQ, S).
        q = q * inv_sqrt_d

        # ---------------- scores + additive mask + stable softmax ----------------
        scores = lax.dot_general(q.astype(jnp.bfloat16), k.astype(jnp.bfloat16),
                                 (((1,), (1,)), ((), ())),
                                 preferred_element_type=jnp.float32)
        scores = scores + add_mask                       # broadcast over query rows
        smax = jnp.max(scores, axis=-1, keepdims=True)
        e = jnp.exp(scores - smax)
        denom = jnp.sum(e, axis=-1, keepdims=True)
        attn = e * pl.reciprocal(denom, approx=True)     # divide on the EUP slot
        attn_ref[...] = attn.astype(attn_ref.dtype)

        # ---------------- attention output + residual 1 ----------------
        ctx = jnp.dot(attn.astype(jnp.bfloat16), v.astype(jnp.bfloat16),
                      preferred_element_type=jnp.float32)
        attn_out = jnp.dot(ctx.astype(jnp.bfloat16), wo_ref[...],
                           preferred_element_type=jnp.float32) + bo_ref[...]
        # TODO(synk): dropout_1 / dropout_2 / FF dropout are identity (eval mode);
        # training-mode dropout would use pltpu.prng_seed + pltpu.stateful_bernoulli.
        x2 = x_tile + attn_out

        # ---------------- LayerNorm 2 + FeedForward + residual 2 (f32 epilogue) ------
        xn2 = _layernorm(x2, g2_ref[...], be2_ref[...])
        h = jnp.dot(xn2.astype(jnp.bfloat16), w1_ref[...],
                    preferred_element_type=jnp.float32) + bf1_ref[...]
        h = jnp.maximum(h, 0.0)
        ff = jnp.dot(h.astype(jnp.bfloat16), w2_ref[...],
                     preferred_element_type=jnp.float32) + bf2_ref[...]
        out_ref[...] = (x2 + ff).astype(out_ref.dtype)

    return kernel


def _vmem_limit_bytes():
    """~75% of physical VMEM, capped at 96 MiB (v5e/v6e 128 MiB -> 96, v7x 64 -> 48)."""
    cap = 128 * 1024 * 1024
    try:
        info = pltpu.get_tpu_info()
        cap = int(getattr(info, "vmem_capacity_bytes", cap))
    except Exception:
        pass
    return max(32 * 1024 * 1024, min((cap * 3) // 4, 96 * 1024 * 1024))


def transformer_block(x, mask, params, *, tq=None):
    """x: (B,S,D) f32, mask: (B,S) int/float (0 = masked) -> ((B,S,D), (B,S,S)).

    `tq` (query tile, multiple of 8 dividing S) adds a second parallel grid axis
    over query tiles — useful for large S / v7x's two TensorCores.  Default: S.
    """
    B, S, D = x.shape
    d_ff = params["w1"].shape[1]
    if tq is None:
        tq = S
    assert S % tq == 0 and (tq == S or tq % 8 == 0), "tq must divide S (multiple of 8)"
    nq = S // tq

    # Additive mask precomputed once: 0 where valid, -1e9 where masked.
    add_mask = jnp.where(mask == 0, _MASK_FILL, 0.0).astype(jnp.float32).reshape(B, 1, S)

    def row(v):   # (N,) -> (1, N) f32 so biases / LN params are 2-D VMEM tiles
        return v.reshape(1, -1).astype(jnp.float32)

    def wbf(v):   # bf16 MXU operands; halves resident-weight VMEM / HBM traffic
        return v.astype(jnp.bfloat16)

    wqkv = jnp.concatenate([params["wq"], params["wk"], params["wv"]], axis=1)  # (D,3D)
    bqkv = jnp.concatenate([params["bq"], params["bk"], params["bv"]], axis=0)  # (3D,)

    ins = (
        x.astype(jnp.float32), add_mask,
        row(params["g1"]), row(params["b1"]),
        wbf(wqkv), row(bqkv),
        wbf(params["wo"]), row(params["bo"]),
        row(params["g2"]), row(params["b2"]),
        wbf(params["w1"]), row(params["bff1"]),
        wbf(params["w2"]), row(params["bff2"]),
    )

    def resident(arr):
        # Whole-array block with a constant index map: fetched once, stays in VMEM.
        return pl.BlockSpec(arr.shape, lambda b, q, _nd=arr.ndim: (0,) * _nd)

    in_specs = [
        pl.BlockSpec((None, S, D), lambda b, q: (b, 0, 0)),   # x (leading dim squeezed)
        pl.BlockSpec((None, 1, S), lambda b, q: (b, 0, 0)),   # additive mask
    ] + [resident(a) for a in ins[2:]]

    out_specs = (
        pl.BlockSpec((None, tq, D), lambda b, q: (b, q, 0)),  # out
        pl.BlockSpec((None, tq, S), lambda b, q: (b, q, 0)),  # attention probabilities
    )
    out_shape = (jax.ShapeDtypeStruct((B, S, D), jnp.float32),
                 jax.ShapeDtypeStruct((B, S, S), jnp.float32))

    # Advisory cost estimate so XLA schedules this custom call sensibly.
    flops = int(B * (8 * S * D * D + 4 * S * S * D + 4 * S * D * d_ff))
    bytes_accessed = int(sum(int(a.size) * a.dtype.itemsize for a in ins)
                         + 4 * (B * S * D + B * S * S))
    cost = pl.CostEstimate(flops=flops,
                           transcendentals=int(B * (S * S + 3 * S)),
                           bytes_accessed=bytes_accessed)

    return pl.pallas_call(
        _make_kernel(tq, S, D),
        grid=(B, nq),
        in_specs=in_specs,
        out_specs=out_specs,
        out_shape=out_shape,
        compiler_params=pltpu.CompilerParams(
            dimension_semantics=("parallel", "parallel"),
            vmem_limit_bytes=_vmem_limit_bytes(),
        ),
        cost_estimate=cost,
    )(*ins)


def transformer_block_ref(x, mask, params):
    """Pure-JAX f32 reference matching the PyTorch forward (eval mode)."""
    def ln(y, g, b):
        mu = y.mean(-1, keepdims=True)
        var = ((y - mu) ** 2).mean(-1, keepdims=True)
        return (y - mu) * lax.rsqrt(var + _LN_EPS) * g + b

    d = x.shape[-1]
    xn = ln(x, params["g1"], params["b1"])
    q = xn @ params["wq"] + params["bq"]
    k = xn @ params["wk"] + params["bk"]
    v = xn @ params["wv"] + params["bv"]
    w = jnp.einsum("bqd,bkd->bqk", q, k) / math.sqrt(d)
    w = jnp.where(mask[:, None, :] == 0, _MASK_FILL, w)
    a = jax.nn.softmax(w, axis=-1)
    attn_out = jnp.einsum("bqk,bkd->bqd", a, v) @ params["wo"] + params["bo"]
    x2 = x + attn_out
    xn2 = ln(x2, params["g2"], params["b2"])
    h = jax.nn.relu(xn2 @ params["w1"] + params["bff1"])
    ff = h @ params["w2"] + params["bff2"]
    return x2 + ff, a


if __name__ == "__main__":
    # Small shapes consistent with the module: batch=2, seq=16, d_model=32, d_ff=64.
    B, S, D, FF = 2, 16, 32, 64

    key = jax.random.PRNGKey(0)
    ks = jax.random.split(key, 14)

    def lin(k, fan_in, shape):
        return jax.random.normal(k, shape, dtype=jnp.float32) / math.sqrt(fan_in)

    params = dict(
        g1=jnp.ones((D,), jnp.float32), b1=jnp.zeros((D,), jnp.float32),
        wq=lin(ks[0], D, (D, D)), bq=lin(ks[1], D, (D,)),
        wk=lin(ks[2], D, (D, D)), bk=lin(ks[3], D, (D,)),
        wv=lin(ks[4], D, (D, D)), bv=lin(ks[5], D, (D,)),
        wo=lin(ks[6], D, (D, D)), bo=lin(ks[7], D, (D,)),
        g2=jnp.ones((D,), jnp.float32), b2=jnp.zeros((D,), jnp.float32),
        w1=lin(ks[8], D, (D, FF)), bff1=lin(ks[9], D, (FF,)),
        w2=lin(ks[10], FF, (FF, D)), bff2=lin(ks[11], FF, (D,)),
    )

    x = jax.random.normal(ks[12], (B, S, D), dtype=jnp.float32)
    # Padding mask: batch 0 fully valid; batch 1 masks the last 5 key positions.
    mask = jnp.ones((B, S), dtype=jnp.int32).at[1, S - 5:].set(0)

    out_r, attn_r = transformer_block_ref(x, mask, params)

    # Exercise both code paths: fused-QKV (tq == S) and query-tiled (tq = 8).
    for tq in (None, 8):
        out, attn = transformer_block(x, mask, params, tq=tq)
        out = jax.block_until_ready(out)
        attn = jax.block_until_ready(attn)
        assert out.shape == (B, S, D) and attn.shape == (B, S, S)
        # bf16 MXU operands -> tolerance loosened vs the f32 reference.
        assert jnp.allclose(out, out_r, atol=5e-2, rtol=5e-2), \
            f"output mismatch vs reference (tq={tq})"
        assert jnp.allclose(attn, attn_r, atol=5e-2, rtol=5e-2), \
            f"attention mismatch vs reference (tq={tq})"

    print("KERNEL_OK")
</pallas_src>

<mosaic_0001>
module attributes {stable_mosaic.version = 11 : i64} {
  func.func @kernel(%arg0: i32, %arg1: i32, %arg2: memref<1x16x32xf32, #tpu.memory_space<vmem>>, %arg3: memref<1x1x16xf32, #tpu.memory_space<vmem>>, %arg4: memref<1x32xf32, #tpu.memory_space<vmem>>, %arg5: memref<1x32xf32, #tpu.memory_space<vmem>>, %arg6: memref<32x96xbf16, #tpu.memory_space<vmem>>, %arg7: memref<1x96xf32, #tpu.memory_space<vmem>>, %arg8: memref<32x32xbf16, #tpu.memory_space<vmem>>, %arg9: memref<1x32xf32, #tpu.memory_space<vmem>>, %arg10: memref<1x32xf32, #tpu.memory_space<vmem>>, %arg11: memref<1x32xf32, #tpu.memory_space<vmem>>, %arg12: memref<32x64xbf16, #tpu.memory_space<vmem>>, %arg13: memref<1x64xf32, #tpu.memory_space<vmem>>, %arg14: memref<64x32xbf16, #tpu.memory_space<vmem>>, %arg15: memref<1x32xf32, #tpu.memory_space<vmem>>, %arg16: memref<1x16x32xf32, #tpu.memory_space<vmem>>, %arg17: memref<1x16x16xf32, #tpu.memory_space<vmem>>) attributes {dimension_semantics = [#tpu.dimension_semantics<parallel>, #tpu.dimension_semantics<parallel>], iteration_bounds = array<i64: 2, 1>, scalar_prefetch = 0 : i64, scratch_operands = 0 : i64, tpu.core_type = #tpu.core_type<tc>, window_params = [{transform_indices = @transform_0, window_bounds = array<i64: 1, 16, 32>}, {transform_indices = @transform_1, window_bounds = array<i64: 1, 1, 16>}, {pipeline_mode = #tpu.pipeline_mode<synchronous>, transform_indices = @transform_2, window_bounds = array<i64: 1, 32>}, {pipeline_mode = #tpu.pipeline_mode<synchronous>, transform_indices = @transform_3, window_bounds = array<i64: 1, 32>}, {pipeline_mode = #tpu.pipeline_mode<synchronous>, transform_indices = @transform_4, window_bounds = array<i64: 32, 96>}, {pipeline_mode = #tpu.pipeline_mode<synchronous>, transform_indices = @transform_5, window_bounds = array<i64: 1, 96>}, {pipeline_mode = #tpu.pipeline_mode<synchronous>, transform_indices = @transform_6, window_bounds = array<i64: 32, 32>}, {pipeline_mode = #tpu.pipeline_mode<synchronous>, transform_indices = @transform_7, window_bounds = array<i64: 1, 32>}, {pipeline_mode = #tpu.pipeline_mode<synchronous>, transform_indices = @transform_8, window_bounds = array<i64: 1, 32>}, {pipeline_mode = #tpu.pipeline_mode<synchronous>, transform_indices = @transform_9, window_bounds = array<i64: 1, 32>}, {pipeline_mode = #tpu.pipeline_mode<synchronous>, transform_indices = @transform_10, window_bounds = array<i64: 32, 64>}, {pipeline_mode = #tpu.pipeline_mode<synchronous>, transform_indices = @transform_11, window_bounds = array<i64: 1, 64>}, {pipeline_mode = #tpu.pipeline_mode<synchronous>, transform_indices = @transform_12, window_bounds = array<i64: 64, 32>}, {pipeline_mode = #tpu.pipeline_mode<synchronous>, transform_indices = @transform_13, window_bounds = array<i64: 1, 32>}, {transform_indices = @transform_14, window_bounds = array<i64: 1, 16, 32>}, {transform_indices = @transform_15, window_bounds = array<i64: 1, 16, 16>}]} {
    %c0 = arith.constant 0 : index
    %c0_0 = arith.constant 0 : index
    %c0_1 = arith.constant 0 : index
    %0 = vector.load %arg2[%c0, %c0_0, %c0_1] : memref<1x16x32xf32, #tpu.memory_space<vmem>>, vector<1x16x32xf32>
    %1 = vector.shape_cast %0 : vector<1x16x32xf32> to vector<16x32xf32>
    %c0_2 = arith.constant 0 : index
    %c0_3 = arith.constant 0 : index
    %c0_4 = arith.constant 0 : index
    %2 = vector.load %arg3[%c0_2, %c0_3, %c0_4] : memref<1x1x16xf32, #tpu.memory_space<vmem>>, vector<1x1x16xf32>
    %3 = vector.shape_cast %2 : vector<1x1x16xf32> to vector<1x16xf32>
    %c0_5 = arith.constant 0 : index
    %c0_6 = arith.constant 0 : index
    %4 = vector.load %arg4[%c0_5, %c0_6] : memref<1x32xf32, #tpu.memory_space<vmem>>, vector<1x32xf32>
    %c0_7 = arith.constant 0 : index
    %c0_8 = arith.constant 0 : index
    %5 = vector.load %arg5[%c0_7, %c0_8] : memref<1x32xf32, #tpu.memory_space<vmem>>, vector<1x32xf32>
    %cst = arith.constant dense<0.000000e+00> : vector<16xf32>
    %6 = vector.multi_reduction <add>, %1, %cst [1] : vector<16x32xf32> to vector<16xf32>
    %7 = vector.shape_cast %6 : vector<16xf32> to vector<16x1xf32>
    %cst_9 = arith.constant 3.200000e+01 : f32
    %8 = vector.broadcast %cst_9 : f32 to vector<16x1xf32>
    %9 = arith.divf %7, %8 : vector<16x1xf32>
    %10 = vector.broadcast %9 : vector<16x1xf32> to vector<16x32xf32>
    %11 = arith.subf %1, %10 : vector<16x32xf32>
    %12 = arith.mulf %11, %11 : vector<16x32xf32>
    %cst_10 = arith.constant dense<0.000000e+00> : vector<16xf32>
    %13 = vector.multi_reduction <add>, %12, %cst_10 [1] : vector<16x32xf32> to vector<16xf32>
    %14 = vector.shape_cast %13 : vector<16xf32> to vector<16x1xf32>
    %cst_11 = arith.constant 3.200000e+01 : f32
    %15 = vector.broadcast %cst_11 : f32 to vector<16x1xf32>
    %16 = arith.divf %14, %15 : vector<16x1xf32>
    %17 = vector.broadcast %9 : vector<16x1xf32> to vector<16x32xf32>
    %18 = arith.subf %1, %17 : vector<16x32xf32>
    %cst_12 = arith.constant 9.99999974E-6 : f32
    %19 = vector.broadcast %cst_12 : f32 to vector<16x1xf32>
    %20 = arith.addf %16, %19 : vector<16x1xf32>
    %21 = math.rsqrt %20 : vector<16x1xf32>
    %22 = vector.broadcast %21 : vector<16x1xf32> to vector<16x32xf32>
    %23 = arith.mulf %18, %22 : vector<16x32xf32>
    %24 = vector.broadcast %4 : vector<1x32xf32> to vector<16x32xf32>
    %25 = arith.mulf %23, %24 : vector<16x32xf32>
    %26 = vector.broadcast %5 : vector<1x32xf32> to vector<16x32xf32>
    %27 = arith.addf %25, %26 : vector<16x32xf32>
    %28 = arith.truncf %27 : vector<16x32xf32> to vector<16x32xbf16>
    %c0_13 = arith.constant 0 : index
    %c0_14 = arith.constant 0 : index
    %29 = vector.load %arg6[%c0_13, %c0_14] : memref<32x96xbf16, #tpu.memory_space<vmem>>, vector<32x96xbf16>
    %cst_15 = arith.constant dense<0.000000e+00> : vector<16x96xf32>
    %30 = tpu.matmul %28, %29, %cst_15 {dimension_numbers = #tpu.dot_dimension_numbers<[1], [0], [0], [1], [0, 0, 1, 1], [], []>} : vector<16x32xbf16>, vector<32x96xbf16>, vector<16x96xf32> -> vector<16x96xf32>
    %c0_16 = arith.constant 0 : index
    %c0_17 = arith.constant 0 : index
    %31 = vector.load %arg7[%c0_16, %c0_17] : memref<1x96xf32, #tpu.memory_space<vmem>>, vector<1x96xf32>
    %32 = vector.broadcast %31 : vector<1x96xf32> to vector<16x96xf32>
    %33 = arith.addf %30, %32 : vector<16x96xf32>
    %34 = vector.extract_strided_slice %33 {offsets = [0, 0], sizes = [16, 32], strides = [1, 1]} : vector<16x96xf32> to vector<16x32xf32>
    %35 = vector.extract_strided_slice %33 {offsets = [0, 32], sizes = [16, 32], strides = [1, 1]} : vector<16x96xf32> to vector<16x32xf32>
    %36 = vector.extract_strided_slice %33 {offsets = [0, 64], sizes = [16, 32], strides = [1, 1]} : vector<16x96xf32> to vector<16x32xf32>
    %cst_18 = arith.constant 0.176776692 : f32
    %37 = vector.broadcast %cst_18 : f32 to vector<16x32xf32>
    %38 = arith.mulf %34, %37 : vector<16x32xf32>
    %39 = arith.truncf %38 : vector<16x32xf32> to vector<16x32xbf16>
    %40 = arith.truncf %35 : vector<16x32xf32> to vector<16x32xbf16>
    %cst_19 = arith.constant dense<0.000000e+00> : vector<16x16xf32>
    %41 = tpu.matmul %39, %40, %cst_19 {dimension_numbers = #tpu.dot_dimension_numbers<[1], [1], [0], [0], [0, 0, 1, 0], [], []>} : vector<16x32xbf16>, vector<16x32xbf16>, vector<16x16xf32> -> vector<16x16xf32>
    %42 = vector.broadcast %3 : vector<1x16xf32> to vector<16x16xf32>
    %43 = arith.addf %41, %42 : vector<16x16xf32>
    %cst_20 = arith.constant dense<0xFF800000> : vector<16xf32>
    %44 = vector.multi_reduction <maximumf>, %43, %cst_20 [1] : vector<16x16xf32> to vector<16xf32>
    %45 = vector.shape_cast %44 : vector<16xf32> to vector<16x1xf32>
    %46 = vector.broadcast %45 : vector<16x1xf32> to vector<16x16xf32>
    %47 = arith.subf %43, %46 : vector<16x16xf32>
    %48 = math.exp %47 : vector<16x16xf32>
    %cst_21 = arith.constant dense<0.000000e+00> : vector<16xf32>
    %49 = vector.multi_reduction <add>, %48, %cst_21 [1] : vector<16x16xf32> to vector<16xf32>
    %50 = vector.shape_cast %49 : vector<16xf32> to vector<16x1xf32>
    %51 = tpu.reciprocal %50 {approx = true} : vector<16x1xf32> -> vector<16x1xf32>
    %52 = vector.broadcast %51 : vector<16x1xf32> to vector<16x16xf32>
    %53 = arith.mulf %48, %52 : vector<16x16xf32>
    %c0_22 = arith.constant 0 : index
    %c0_23 = arith.constant 0 : index
    %c0_24 = arith.constant 0 : index
    %54 = vector.load %arg17[%c0_22, %c0_23, %c0_24] : memref<1x16x16xf32, #tpu.memory_space<vmem>>, vector<1x16x16xf32>
    %55 = vector.shape_cast %54 : vector<1x16x16xf32> to vector<16x16xf32>
    %56 = vector.shape_cast %53 : vector<16x16xf32> to vector<1x16x16xf32>
    tpu.vector_store %arg17[%c0_22, %c0_23, %c0_24], %56 {strides = array<i32>} : memref<1x16x16xf32, #tpu.memory_space<vmem>>, vector<1x16x16xf32>,
    %57 = arith.truncf %53 : vector<16x16xf32> to vector<16x16xbf16>
    %58 = arith.truncf %36 : vector<16x32xf32> to vector<16x32xbf16>
    %cst_25 = arith.constant dense<0.000000e+00> : vector<16x32xf32>
    %59 = tpu.matmul %57, %58, %cst_25 {dimension_numbers = #tpu.dot_dimension_numbers<[1], [0], [0], [1], [0, 0, 1, 1], [], []>} : vector<16x16xbf16>, vector<16x32xbf16>, vector<16x32xf32> -> vector<16x32xf32>
    %60 = arith.truncf %59 : vector<16x32xf32> to vector<16x32xbf16>
    %c0_26 = arith.constant 0 : index
    %c0_27 = arith.constant 0 : index
    %61 = vector.load %arg8[%c0_26, %c0_27] : memref<32x32xbf16, #tpu.memory_space<vmem>>, vector<32x32xbf16>
    %cst_28 = arith.constant dense<0.000000e+00> : vector<16x32xf32>
    %62 = tpu.matmul %60, %61, %cst_28 {dimension_numbers = #tpu.dot_dimension_numbers<[1], [0], [0], [1], [0, 0, 1, 1], [], []>} : vector<16x32xbf16>, vector<32x32xbf16>, vector<16x32xf32> -> vector<16x32xf32>
    %c0_29 = arith.constant 0 : index
    %c0_30 = arith.constant 0 : index
    %63 = vector.load %arg9[%c0_29, %c0_30] : memref<1x32xf32, #tpu.memory_space<vmem>>, vector<1x32xf32>
    %64 = vector.broadcast %63 : vector<1x32xf32> to vector<16x32xf32>
    %65 = arith.addf %62, %64 : vector<16x32xf32>
    %66 = arith.addf %1, %65 : vector<16x32xf32>
    %c0_31 = arith.constant 0 : index
    %c0_32 = arith.constant 0 : index
    %67 = vector.load %arg10[%c0_31, %c0_32] : memref<1x32xf32, #tpu.memory_space<vmem>>, vector<1x32xf32>
    %c0_33 = arith.constant 0 : index
    %c0_34 = arith.constant 0 : index
    %68 = vector.load %arg11[%c0_33, %c0_34] : memref<1x32xf32, #tpu.memory_space<vmem>>, vector<1x32xf32>
    %cst_35 = arith.constant dense<0.000000e+00> : vector<16xf32>
    %69 = vector.multi_reduction <add>, %66, %cst_35 [1] : vector<16x32xf32> to vector<16xf32>
    %70 = vector.shape_cast %69 : vector<16xf32> to vector<16x1xf32>
    %cst_36 = arith.constant 3.200000e+01 : f32
    %71 = vector.broadcast %cst_36 : f32 to vector<16x1xf32>
    %72 = arith.divf %70, %71 : vector<16x1xf32>
    %73 = vector.broadcast %72 : vector<16x1xf32> to vector<16x32xf32>
    %74 = arith.subf %66, %73 : vector<16x32xf32>
    %75 = arith.mulf %74, %74 : vector<16x32xf32>
    %cst_37 = arith.constant dense<0.000000e+00> : vector<16xf32>
    %76 = vector.multi_reduction <add>, %75, %cst_37 [1] : vector<16x32xf32> to vector<16xf32>
    %77 = vector.shape_cast %76 : vector<16xf32> to vector<16x1xf32>
    %cst_38 = arith.constant 3.200000e+01 : f32
    %78 = vector.broadcast %cst_38 : f32 to vector<16x1xf32>
    %79 = arith.divf %77, %78 : vector<16x1xf32>
    %80 = vector.broadcast %72 : vector<16x1xf32> to vector<16x32xf32>
    %81 = arith.subf %66, %80 : vector<16x32xf32>
    %cst_39 = arith.constant 9.99999974E-6 : f32
    %82 = vector.broadcast %cst_39 : f32 to vector<16x1xf32>
    %83 = arith.addf %79, %82 : vector<16x1xf32>
    %84 = math.rsqrt %83 : vector<16x1xf32>
    %85 = vector.broadcast %84 : vector<16x1xf32> to vector<16x32xf32>
    %86 = arith.mulf %81, %85 : vector<16x32xf32>
    %87 = vector.broadcast %67 : vector<1x32xf32> to vector<16x32xf32>
    %88 = arith.mulf %86, %87 : vector<16x32xf32>
    %89 = vector.broadcast %68 : vector<1x32xf32> to vector<16x32xf32>
    %90 = arith.addf %88, %89 : vector<16x32xf32>
    %91 = arith.truncf %90 : vector<16x32xf32> to vector<16x32xbf16>
    %c0_40 = arith.constant 0 : index
    %c0_41 = arith.constant 0 : index
    %92 = vector.load %arg12[%c0_40, %c0_41] : memref<32x64xbf16, #tpu.memory_space<vmem>>, vector<32x64xbf16>
    %cst_42 = arith.constant dense<0.000000e+00> : vector<16x64xf32>
    %93 = tpu.matmul %91, %92, %cst_42 {dimension_numbers = #tpu.dot_dimension_numbers<[1], [0], [0], [1], [0, 0, 1, 1], [], []>} : vector<16x32xbf16>, vector<32x64xbf16>, vector<16x64xf32> -> vector<16x64xf32>
    %c0_43 = arith.constant 0 : index
    %c0_44 = arith.constant 0 : index
    %94 = vector.load %arg13[%c0_43, %c0_44] : memref<1x64xf32, #tpu.memory_space<vmem>>, vector<1x64xf32>
    %95 = vector.broadcast %94 : vector<1x64xf32> to vector<16x64xf32>
    %96 = arith.addf %93, %95 : vector<16x64xf32>
    %cst_45 = arith.constant 0.000000e+00 : f32
    %97 = vector.broadcast %cst_45 : f32 to vector<16x64xf32>
    %98 = arith.maximumf %96, %97 : vector<16x64xf32>
    %99 = arith.truncf %98 : vector<16x64xf32> to vector<16x64xbf16>
    %c0_46 = arith.constant 0 : index
    %c0_47 = arith.constant 0 : index
    %100 = vector.load %arg14[%c0_46, %c0_47] : memref<64x32xbf16, #tpu.memory_space<vmem>>, vector<64x32xbf16>
    %cst_48 = arith.constant dense<0.000000e+00> : vector<16x32xf32>
    %101 = tpu.matmul %99, %100, %cst_48 {dimension_numbers = #tpu.dot_dimension_numbers<[1], [0], [0], [1], [0, 0, 1, 1], [], []>} : vector<16x64xbf16>, vector<64x32xbf16>, vector<16x32xf32> -> vector<16x32xf32>
    %c0_49 = arith.constant 0 : index
    %c0_50 = arith.constant 0 : index
    %102 = vector.load %arg15[%c0_49, %c0_50] : memref<1x32xf32, #tpu.memory_space<vmem>>, vector<1x32xf32>
    %103 = vector.broadcast %102 : vector<1x32xf32> to vector<16x32xf32>
    %104 = arith.addf %101, %103 : vector<16x32xf32>
    %105 = arith.addf %66, %104 : vector<16x32xf32>
    %c0_51 = arith.constant 0 : index
    %c0_52 = arith.constant 0 : index
    %c0_53 = arith.constant 0 : index
    %106 = vector.load %arg16[%c0_51, %c0_52, %c0_53] : memref<1x16x32xf32, #tpu.memory_space<vmem>>, vector<1x16x32xf32>
    %107 = vector.shape_cast %106 : vector<1x16x32xf32> to vector<16x32xf32>
    %108 = vector.shape_cast %105 : vector<16x32xf32> to vector<1x16x32xf32>
    tpu.vector_store %arg16[%c0_51, %c0_52, %c0_53], %108 {strides = array<i32>} : memref<1x16x32xf32, #tpu.memory_space<vmem>>, vector<1x16x32xf32>,
    return
  }
  func.func @transform_0(%arg0: i32, %arg1: i32) -> (i32, i32, i32) {
    %c0_i32 = arith.constant 0 : i32
    %c0_i32_0 = arith.constant 0 : i32
    %c0_i32_1 = arith.constant 0 : i32
    return %arg0, %c0_i32, %c0_i32_0 : i32, i32, i32
  }
  func.func @transform_1(%arg0: i32, %arg1: i32) -> (i32, i32, i32) {
    %c0_i32 = arith.constant 0 : i32
    %c0_i32_0 = arith.constant 0 : i32
    %c0_i32_1 = arith.constant 0 : i32
    return %arg0, %c0_i32, %c0_i32_0 : i32, i32, i32
  }
  func.func @transform_2(%arg0: i32, %arg1: i32) -> (i32, i32) {
    %c0_i32 = arith.constant 0 : i32
    %c0_i32_0 = arith.constant 0 : i32
    %c0_i32_1 = arith.constant 0 : i32
    return %c0_i32, %c0_i32_0 : i32, i32
  }
  func.func @transform_3(%arg0: i32, %arg1: i32) -> (i32, i32) {
    %c0_i32 = arith.constant 0 : i32
    %c0_i32_0 = arith.constant 0 : i32
    %c0_i32_1 = arith.constant 0 : i32
    return %c0_i32, %c0_i32_0 : i32, i32
  }
  func.func @transform_4(%arg0: i32, %arg1: i32) -> (i32, i32) {
    %c0_i32 = arith.constant 0 : i32
    %c0_i32_0 = arith.constant 0 : i32
    %c0_i32_1 = arith.constant 0 : i32
    return %c0_i32, %c0_i32_0 : i32, i32
  }
  func.func @transform_5(%arg0: i32, %arg1: i32) -> (i32, i32) {
    %c0_i32 = arith.constant 0 : i32
    %c0_i32_0 = arith.constant 0 : i32
    %c0_i32_1 = arith.constant 0 : i32
    return %c0_i32, %c0_i32_0 : i32, i32
  }
  func.func @transform_6(%arg0: i32, %arg1: i32) -> (i32, i32) {
    %c0_i32 = arith.constant 0 : i32
    %c0_i32_0 = arith.constant 0 : i32
    %c0_i32_1 = arith.constant 0 : i32
    return %c0_i32, %c0_i32_0 : i32, i32
  }
  func.func @transform_7(%arg0: i32, %arg1: i32) -> (i32, i32) {
    %c0_i32 = arith.constant 0 : i32
    %c0_i32_0 = arith.constant 0 : i32
    %c0_i32_1 = arith.constant 0 : i32
    return %c0_i32, %c0_i32_0 : i32, i32
  }
  func.func @transform_8(%arg0: i32, %arg1: i32) -> (i32, i32) {
    %c0_i32 = arith.constant 0 : i32
    %c0_i32_0 = arith.constant 0 : i32
    %c0_i32_1 = arith.constant 0 : i32
    return %c0_i32, %c0_i32_0 : i32, i32
  }
  func.func @transform_9(%arg0: i32, %arg1: i32) -> (i32, i32) {
    %c0_i32 = arith.constant 0 : i32
    %c0_i32_0 = arith.constant 0 : i32
    %c0_i32_1 = arith.constant 0 : i32
    return %c0_i32, %c0_i32_0 : i32, i32
  }
  func.func @transform_10(%arg0: i32, %arg1: i32) -> (i32, i32) {
    %c0_i32 = arith.constant 0 : i32
    %c0_i32_0 = arith.constant 0 : i32
    %c0_i32_1 = arith.constant 0 : i32
    return %c0_i32, %c0_i32_0 : i32, i32
  }
  func.func @transform_11(%arg0: i32, %arg1: i32) -> (i32, i32) {
    %c0_i32 = arith.constant 0 : i32
    %c0_i32_0 = arith.constant 0 : i32
    %c0_i32_1 = arith.constant 0 : i32
    return %c0_i32, %c0_i32_0 : i32, i32
  }
  func.func @transform_12(%arg0: i32, %arg1: i32) -> (i32, i32) {
    %c0_i32 = arith.constant 0 : i32
    %c0_i32_0 = arith.constant 0 : i32
    %c0_i32_1 = arith.constant 0 : i32
    return %c0_i32, %c0_i32_0 : i32, i32
  }
  func.func @transform_13(%arg0: i32, %arg1: i32) -> (i32, i32) {
    %c0_i32 = arith.constant 0 : i32
    %c0_i32_0 = arith.constant 0 : i32
    %c0_i32_1 = arith.constant 0 : i32
    return %c0_i32, %c0_i32_0 : i32, i32
  }
  func.func @transform_14(%arg0: i32, %arg1: i32) -> (i32, i32, i32) {
    %c0_i32 = arith.constant 0 : i32
    %c0_i32_0 = arith.constant 0 : i32
    return %arg0, %arg1, %c0_i32 : i32, i32, i32
  }
  func.func @transform_15(%arg0: i32, %arg1: i32) -> (i32, i32, i32) {
    %c0_i32 = arith.constant 0 : i32
    %c0_i32_0 = arith.constant 0 : i32
    return %arg0, %arg1, %c0_i32 : i32, i32, i32
  }
}

</mosaic_0001>

<llo_original>
// kernel: tpu_custom_call.1
$region0: #{tpu_custom_call.1}
  #allocation0 [shape = 'u32[]', space=smem, size = 0x4, offset = 0x4, fixed_abs, tag = 'smem constant byte address 0x4 - core index']
  #allocation1 [shape = 'u32[144,128]{1,0:T(1,128)}', space=vmem, size = 0x12000, scoped, tag = 'internal scratch']
  %s0 = inlined_call_operand.hbm [shape: f32[2,16,32], index: 0, kind: input, shape index: {}]
  %s1 = inlined_call_operand.hbm [shape: f32[2,1,16], index: 1, kind: input, shape index: {}]
  %s2 = inlined_call_operand.hbm [shape: f32[1,32], index: 2, kind: input, shape index: {}]
  %s3 = inlined_call_operand.hbm [shape: f32[1,32], index: 3, kind: input, shape index: {}]
  %s4 = inlined_call_operand.hbm [shape: bf16[32,96], index: 4, kind: input, shape index: {}]
  %s5 = inlined_call_operand.hbm [shape: f32[1,96], index: 5, kind: input, shape index: {}]
  %s6 = inlined_call_operand.hbm [shape: bf16[32,32], index: 6, kind: input, shape index: {}]
  %s7 = inlined_call_operand.hbm [shape: f32[1,32], index: 7, kind: input, shape index: {}]
  %s8 = inlined_call_operand.hbm [shape: f32[1,32], index: 8, kind: input, shape index: {}]
  %s9 = inlined_call_operand.hbm [shape: f32[1,32], index: 9, kind: input, shape index: {}]
  %s10 = inlined_call_operand.hbm [shape: bf16[32,64], index: 10, kind: input, shape index: {}]
  %s11 = inlined_call_operand.hbm [shape: f32[1,64], index: 11, kind: input, shape index: {}]
  %s12 = inlined_call_operand.hbm [shape: bf16[64,32], index: 12, kind: input, shape index: {}]
  %s13 = inlined_call_operand.hbm [shape: f32[1,32], index: 13, kind: input, shape index: {}]
  %s14 = inlined_call_operand.hbm [shape: f32[2,16,32], index: 14, kind: output, shape index: {0}]
  %s15 = inlined_call_operand.hbm [shape: f32[2,16,16], index: 15, kind: output, shape index: {1}]
  %16 = xla_tuple %s14, %s15
  %s17 = sld [smem:[#allocation0]]
  $region153: #{tpu_custom_call.1} parent=0
    _
  %s19 = ssub.s32 1, %s17
  %s20 = scalar_select 0, %s19, %s17
  $region1: #{tpu_custom_call.1} parent=0
    #allocation2 [shape = 'u8[16384]{0}', space=vmem, size = 0x4000, scoped, tag = 'input window, operand 0']
    #allocation3 [shape = 's32[2]{0}', space=sflag, size = 0x8, scoped, tag = 'scoped memory for tpu_custom_call.1']
    #allocation4 [shape = 's32[2]{0}', space=sflag, size = 0x8, scoped, tag = 'scoped memory for tpu_custom_call.1']
    #allocation5 [shape = 'u8[1024]{0}', space=vmem, size = 0x400, scoped, tag = 'input window, operand 1']
    #allocation6 [shape = 's32[2]{0}', space=sflag, size = 0x8, scoped, tag = 'scoped memory for tpu_custom_call.1']
    #allocation7 [shape = 'u8[512]{0}', space=vmem, size = 0x400, scoped, tag = 'input window, operand 2, single buffered']
    #allocation8 [shape = 'u8[512]{0}', space=vmem, size = 0x400, scoped, tag = 'input window, operand 3, single buffered']
    #allocation9 [shape = 's32[1]{0}', space=sflag, size = 0x4, scoped, tag = 'scoped memory for tpu_custom_call.1']
    #allocation10 [shape = 'u8[8192]{0}', space=vmem, size = 0x2000, scoped, tag = 'input window, operand 4, single buffered']
    #allocation11 [shape = 'u8[512]{0}', space=vmem, size = 0x400, scoped, tag = 'input window, operand 5, single buffered']
    #allocation12 [shape = 's32[1]{0}', space=sflag, size = 0x4, scoped, tag = 'scoped memory for tpu_custom_call.1']
    #allocation13 [shape = 'u8[8192]{0}', space=vmem, size = 0x2000, scoped, tag = 'input window, operand 6, single buffered']
    #allocation14 [shape = 'u8[512]{0}', space=vmem, size = 0x400, scoped, tag = 'input window, operand 7, single buffered']
    #allocation15 [shape = 's32[1]{0}', space=sflag, size = 0x4, scoped, tag = 'scoped memory for tpu_custom_call.1']
    #allocation16 [shape = 'u8[512]{0}', space=vmem, size = 0x400, scoped, tag = 'input window, operand 8, single buffered']
    #allocation17 [shape = 'u8[512]{0}', space=vmem, size = 0x400, scoped, tag = 'input window, operand 9, single buffered']
    #allocation18 [shape = 's32[1]{0}', space=sflag, size = 0x4, scoped, tag = 'scoped memory for tpu_custom_call.1']
    #allocation19 [shape = 'u8[8192]{0}', space=vmem, size = 0x2000, scoped, tag = 'input window, operand 10, single buffered']
    #allocation20 [shape = 'u8[512]{0}', space=vmem, size = 0x400, scoped, tag = 'input window, operand 11, single buffered']
    #allocation21 [shape = 's32[1]{0}', space=sflag, size = 0x4, scoped, tag = 'scoped memory for tpu_custom_call.1']
    #allocation22 [shape = 'u8[16384]{0}', space=vmem, size = 0x4000, scoped, tag = 'input window, operand 12, single buffered']
    #allocation23 [shape = 'u8[512]{0}', space=vmem, size = 0x400, scoped, tag = 'input window, operand 13, single buffered']
    #allocation24 [shape = 's32[1]{0}', space=sflag, size = 0x4, scoped, tag = 'scoped memory for tpu_custom_call.1']
    #allocation25 [shape = 'u8[16384]{0}', space=vmem, size = 0x4000, scoped, tag = 'output window, operand 0']
    #allocation26 [shape = 'u8[16384]{0}', space=vmem, size = 0x4000, scoped, tag = 'output window, operand 1']
    #allocation27 [shape = 's32[2]{0}', space=sflag, size = 0x8, scoped, tag = 'scoped memory for tpu_custom_call.1']
    %21 = vsyncpa [#allocation3], 0
    %s22 = scalar_lea.sflag [#allocation3], 1
    %23 = vsyncpa %s22, 0
    %24 = vsyncpa [#allocation6], 0
    %s25 = scalar_lea.sflag [#allocation6], 1
    %26 = vsyncpa %s25, 0
    %27 = vsyncpa [#allocation9], 0
    %28 = vsyncpa [#allocation12], 0
    %29 = vsyncpa [#allocation15], 0
    %30 = vsyncpa [#allocation18], 0
    %31 = vsyncpa [#allocation21], 0
    %32 = vsyncpa [#allocation24], 0
    %33 = vsyncpa [#allocation4], 0
    %s34 = scalar_lea.sflag [#allocation4], 1
    %35 = vsyncpa %s34, 0
    %36 = vsyncpa [#allocation27], 0
    %s37 = scalar_lea.sflag [#allocation27], 1
    %38 = vsyncpa %s37, 0
    loop: start=0, step=1, limit=4
    $region2: #{tpu_custom_call.1} parent=1 // loop_pre_header
      _
    $region3: #{tpu_custom_call.1} parent=1 // loop_header
      %s40 = sphi 0, %s44
      %p41 = scmp.ge.s32.totalorder %s40, 4
      %s47 = sphi 0, %s59
      %s48 = sphi 0, %s55
      %s49 = sphi 0, %s47
      %s50 = sphi 0, %s48
      %s51 = sphi 0, %s49
      %s52 = sphi 0, %s50
      %s62 = sphi 0, %s64
      %s65 = sphi 0, %s62
      %s66 = sphi 0, %s65
      %s82 = sphi 0, %s66
      %s88 = sphi 0, %s90
      %s91 = sphi 0, %s88
      %s92 = sphi 0, %s91
      %s108 = sphi 0, %s92
      %s112 = sphi 0, %s112
      %s114 = sphi 0, %s112
      %s115 = sphi 0, %s114
      %s129 = sphi 0, %s115
      %s133 = sphi 0, %s133
      %s135 = sphi 0, %s133
      %s136 = sphi 0, %s135
      %s150 = sphi 0, %s136
      %s154 = sphi 0, %s154
      %s156 = sphi 0, %s154
      %s157 = sphi 0, %s156
      %s171 = sphi 0, %s157
      %s175 = sphi 0, %s175
      %s177 = sphi 0, %s175
      %s178 = sphi 0, %s177
      %s192 = sphi 0, %s178
      %s196 = sphi 0, %s196
      %s198 = sphi 0, %s196
      %s199 = sphi 0, %s198
      %s213 = sphi 0, %s199
      %s217 = sphi 0, %s217
      %s219 = sphi 0, %s217
      %s220 = sphi 0, %s219
      %s234 = sphi 0, %s220
      %s238 = sphi 0, %s238
      %s240 = sphi 0, %s238
      %s241 = sphi 0, %s240
      %s255 = sphi 0, %s241
      %s259 = sphi 0, %s259
      %s261 = sphi 0, %s259
      %s262 = sphi 0, %s261
      %s276 = sphi 0, %s262
      %s280 = sphi 0, %s280
      %s282 = sphi 0, %s280
      %s283 = sphi 0, %s282
      %s297 = sphi 0, %s283
      %s301 = sphi 0, %s301
      %s303 = sphi 0, %s301
      %s304 = sphi 0, %s303
      %s318 = sphi 0, %s304
      %s322 = sphi 0, %s322
      %s324 = sphi 0, %s322
      %s325 = sphi 0, %s324
      %s339 = sphi 0, %s325
      %s343 = sphi 0, %s343
      %s345 = sphi 0, %s343
      %s346 = sphi 0, %s345
      %s360 = sphi 0, %s346
      %s368 = sphi 0, %s370
      %s371 = sphi 0, %s368
      %s372 = sphi 0, %s371
      %s388 = sphi 0, %s372
      %s396 = sphi 0, %s398
      %s399 = sphi 0, %s396
      %s400 = sphi 0, %s399
      %s416 = sphi 0, %s400
    $region4: #{tpu_custom_call.1} parent=1 // loop_header_branch
      %43 = sbr.rel (%p41) target = $region8
    $region5: #{tpu_custom_call.1} parent=1 // loop_body
      %s45 = ssub.s32 %s40, 1
      %s46 = ssub.s32 %s40, 2
      %s53 = sadd.s32 1, %s48
      %p54 = scmp.ge.s32.totalorder %s53, 1
      %s55 = scalar_select %p54, 0, %s53
      %s56 = sadd.s32 1, %s47
      %s57 = scalar_select %p54, %s56, %s47
      %p58 = scmp.ge.s32.totalorder %s57, 2
      %s59 = scalar_select %p58, 0, %s57
      %s60 = ssub.s32 %s47, %s59
      %p61 = scmp.eq.s32.totalorder %s60, 0
      %s63 = sadd.s32 %s62, 1
      %s64 = scalar_select %p61, %s62, %s63
      %p67 = pneg %p61
      %p68 = scmp.eq.s32.totalorder %s40, 1
      %p69 = por %p67, %p68
      %p70 = scmp.ne.s32.totalorder %s62, %s65
      %p71 = scmp.eq.s32.totalorder %s40, 0
      %p72 = por %p70, %p71
      %p73 = scmp.ne.s32.totalorder %s62, %s65
      %p74 = scmp.eq.s32.totalorder %s45, 1
      %p75 = por %p73, %p74
      %p76 = scmp.ne.s32.totalorder %s65, %s66
      %p77 = scmp.eq.s32.totalorder %s45, 0
      %p78 = por %p76, %p77
      %p79 = scmp.ne.s32.totalorder %s65, %s66
      %p80 = scmp.eq.s32.totalorder %s46, 1
      %p81 = por %p79, %p80
      %p83 = scmp.ne.s32.totalorder %s66, %s82
      %p84 = scmp.eq.s32.totalorder %s46, 0
      %p85 = por %p83, %p84
      %s86 = ssub.s32 %s47, %s59
      %p87 = scmp.eq.s32.totalorder %s86, 0
      %s89 = sadd.s32 %s88, 1
      %s90 = scalar_select %p87, %s88, %s89
      %p93 = pneg %p87
      %p94 = scmp.eq.s32.totalorder %s40, 1
      %p95 = por %p93, %p94
      %p96 = scmp.ne.s32.totalorder %s88, %s91
      %p97 = scmp.eq.s32.totalorder %s40, 0
      %p98 = por %p96, %p97
      %p99 = scmp.ne.s32.totalorder %s88, %s91
      %p100 = scmp.eq.s32.totalorder %s45, 1
      %p101 = por %p99, %p100
      %p102 = scmp.ne.s32.totalorder %s91, %s92
      %p103 = scmp.eq.s32.totalorder %s45, 0
      %p104 = por %p102, %p103
      %p105 = scmp.ne.s32.totalorder %s91, %s92
      %p106 = scmp.eq.s32.totalorder %s46, 1
      %p107 = por %p105, %p106
      %p109 = scmp.ne.s32.totalorder %s92, %s108
      %p110 = scmp.eq.s32.totalorder %s46, 0
      %p111 = por %p109, %p110
      %s113 = sadd.s32 %s112, 1
      %p116 = scmp.eq.s32.totalorder %s40, 1
      %p117 = scmp.ne.s32.totalorder %s112, %s114
      %p118 = scmp.eq.s32.totalorder %s40, 0
      %p119 = por %p117, %p118
      %p120 = scmp.ne.s32.totalorder %s112, %s114
      %p121 = scmp.eq.s32.totalorder %s45, 1
      %p122 = por %p120, %p121
      %p123 = scmp.ne.s32.totalorder %s114, %s115
      %p124 = scmp.eq.s32.totalorder %s45, 0
      %p125 = por %p123, %p124
      %p126 = scmp.ne.s32.totalorder %s114, %s115
      %p127 = scmp.eq.s32.totalorder %s46, 1
      %p128 = por %p126, %p127
      %p130 = scmp.ne.s32.totalorder %s115, %s129
      %p131 = scmp.eq.s32.totalorder %s46, 0
      %p132 = por %p130, %p131
      %s134 = sadd.s32 %s133, 1
      %p137 = scmp.eq.s32.totalorder %s40, 1
      %p138 = scmp.ne.s32.totalorder %s133, %s135
      %p139 = scmp.eq.s32.totalorder %s40, 0
      %p140 = por %p138, %p139
      %p141 = scmp.ne.s32.totalorder %s133, %s135
      %p142 = scmp.eq.s32.totalorder %s45, 1
      %p143 = por %p141, %p142
      %p144 = scmp.ne.s32.totalorder %s135, %s136
      %p145 = scmp.eq.s32.totalorder %s45, 0
      %p146 = por %p144, %p145
      %p147 = scmp.ne.s32.totalorder %s135, %s136
      %p148 = scmp.eq.s32.totalorder %s46, 1
      %p149 = por %p147, %p148
      %p151 = scmp.ne.s32.totalorder %s136, %s150
      %p152 = scmp.eq.s32.totalorder %s46, 0
      %p153 = por %p151, %p152
      %s155 = sadd.s32 %s154, 1
      %p158 = scmp.eq.s32.totalorder %s40, 1
      %p159 = scmp.ne.s32.totalorder %s154, %s156
      %p160 = scmp.eq.s32.totalorder %s40, 0
      %p161 = por %p159, %p160
      %p162 = scmp.ne.s32.totalorder %s154, %s156
      %p163 = scmp.eq.s32.totalorder %s45, 1
      %p164 = por %p162, %p163
      %p165 = scmp.ne.s32.totalorder %s156, %s157
      %p166 = scmp.eq.s32.totalorder %s45, 0
      %p167 = por %p165, %p166
      %p168 = scmp.ne.s32.totalorder %s156, %s157
      %p169 = scmp.eq.s32.totalorder %s46, 1
      %p170 = por %p168, %p169
      %p172 = scmp.ne.s32.totalorder %s157, %s171
      %p173 = scmp.eq.s32.totalorder %s46, 0
      %p174 = por %p172, %p173
      %s176 = sadd.s32 %s175, 1
      %p179 = scmp.eq.s32.totalorder %s40, 1
      %p180 = scmp.ne.s32.totalorder %s175, %s177
      %p181 = scmp.eq.s32.totalorder %s40, 0
      %p182 = por %p180, %p181
      %p183 = scmp.ne.s32.totalorder %s175, %s177
      %p184 = scmp.eq.s32.totalorder %s45, 1
      %p185 = por %p183, %p184
      %p186 = scmp.ne.s32.totalorder %s177, %s178
      %p187 = scmp.eq.s32.totalorder %s45, 0
      %p188 = por %p186, %p187
      %p189 = scmp.ne.s32.totalorder %s177, %s178
      %p190 = scmp.eq.s32.totalorder %s46, 1
      %p191 = por %p189, %p190
      %p193 = scmp.ne.s32.totalorder %s178, %s192
      %p194 = scmp.eq.s32.totalorder %s46, 0
      %p195 = por %p193, %p194
      %s197 = sadd.s32 %s196, 1
      %p200 = scmp.eq.s32.totalorder %s40, 1
      %p201 = scmp.ne.s32.totalorder %s196, %s198
      %p202 = scmp.eq.s32.totalorder %s40, 0
      %p203 = por %p201, %p202
      %p204 = scmp.ne.s32.totalorder %s196, %s198
      %p205 = scmp.eq.s32.totalorder %s45, 1
      %p206 = por %p204, %p205
      %p207 = scmp.ne.s32.totalorder %s198, %s199
      %p208 = scmp.eq.s32.totalorder %s45, 0
      %p209 = por %p207, %p208
      %p210 = scmp.ne.s32.totalorder %s198, %s199
      %p211 = scmp.eq.s32.totalorder %s46, 1
      %p212 = por %p210, %p211
      %p214 = scmp.ne.s32.totalorder %s199, %s213
      %p215 = scmp.eq.s32.totalorder %s46, 0
      %p216 = por %p214, %p215
      %s218 = sadd.s32 %s217, 1
      %p221 = scmp.eq.s32.totalorder %s40, 1
      %p222 = scmp.ne.s32.totalorder %s217, %s219
      %p223 = scmp.eq.s32.totalorder %s40, 0
      %p224 = por %p222, %p223
      %p225 = scmp.ne.s32.totalorder %s217, %s219
      %p226 = scmp.eq.s32.totalorder %s45, 1
      %p227 = por %p225, %p226
      %p228 = scmp.ne.s32.totalorder %s219, %s220
      %p229 = scmp.eq.s32.totalorder %s45, 0
      %p230 = por %p228, %p229
      %p231 = scmp.ne.s32.totalorder %s219, %s220
      %p232 = scmp.eq.s32.totalorder %s46, 1
      %p233 = por %p231, %p232
      %p235 = scmp.ne.s32.totalorder %s220, %s234
      %p236 = scmp.eq.s32.totalorder %s46, 0
      %p237 = por %p235, %p236
      %s239 = sadd.s32 %s238, 1
      %p242 = scmp.eq.s32.totalorder %s40, 1
      %p243 = scmp.ne.s32.totalorder %s238, %s240
      %p244 = scmp.eq.s32.totalorder %s40, 0
      %p245 = por %p243, %p244
      %p246 = scmp.ne.s32.totalorder %s238, %s240
      %p247 = scmp.eq.s32.totalorder %s45, 1
      %p248 = por %p246, %p247
      %p249 = scmp.ne.s32.totalorder %s240, %s241
      %p250 = scmp.eq.s32.totalorder %s45, 0
      %p251 = por %p249, %p250
      %p252 = scmp.ne.s32.totalorder %s240, %s241
      %p253 = scmp.eq.s32.totalorder %s46, 1
      %p254 = por %p252, %p253
      %p256 = scmp.ne.s32.totalorder %s241, %s255
      %p257 = scmp.eq.s32.totalorder %s46, 0
      %p258 = por %p256, %p257
      %s260 = sadd.s32 %s259, 1
      %p263 = scmp.eq.s32.totalorder %s40, 1
      %p264 = scmp.ne.s32.totalorder %s259, %s261
      %p265 = scmp.eq.s32.totalorder %s40, 0
      %p266 = por %p264, %p265
      %p267 = scmp.ne.s32.totalorder %s259, %s261
      %p268 = scmp.eq.s32.totalorder %s45, 1
      %p269 = por %p267, %p268
      %p270 = scmp.ne.s32.totalorder %s261, %s262
      %p271 = scmp.eq.s32.totalorder %s45, 0
      %p272 = por %p270, %p271
      %p273 = scmp.ne.s32.totalorder %s261, %s262
      %p274 = scmp.eq.s32.totalorder %s46, 1
      %p275 = por %p273, %p274
      %p277 = scmp.ne.s32.totalorder %s262, %s276
      %p278 = scmp.eq.s32.totalorder %s46, 0
      %p279 = por %p277, %p278
      %s281 = sadd.s32 %s280, 1
      %p284 = scmp.eq.s32.totalorder %s40, 1
      %p285 = scmp.ne.s32.totalorder %s280, %s282
      %p286 = scmp.eq.s32.totalorder %s40, 0
      %p287 = por %p285, %p286
      %p288 = scmp.ne.s32.totalorder %s280, %s282
      %p289 = scmp.eq.s32.totalorder %s45, 1
      %p290 = por %p288, %p289
      %p291 = scmp.ne.s32.totalorder %s282, %s283
      %p292 = scmp.eq.s32.totalorder %s45, 0
      %p293 = por %p291, %p292
      %p294 = scmp.ne.s32.totalorder %s282, %s283
      %p295 = scmp.eq.s32.totalorder %s46, 1
      %p296 = por %p294, %p295
      %p298 = scmp.ne.s32.totalorder %s283, %s297
      %p299 = scmp.eq.s32.totalorder %s46, 0
      %p300 = por %p298, %p299
      %s302 = sadd.s32 %s301, 1
      %p305 = scmp.eq.s32.totalorder %s40, 1
      %p306 = scmp.ne.s32.totalorder %s301, %s303
      %p307 = scmp.eq.s32.totalorder %s40, 0
      %p308 = por %p306, %p307
      %p309 = scmp.ne.s32.totalorder %s301, %s303
      %p310 = scmp.eq.s32.totalorder %s45, 1
      %p311 = por %p309, %p310
      %p312 = scmp.ne.s32.totalorder %s303, %s304
      %p313 = scmp.eq.s32.totalorder %s45, 0
      %p314 = por %p312, %p313
      %p315 = scmp.ne.s32.totalorder %s303, %s304
      %p316 = scmp.eq.s32.totalorder %s46, 1
      %p317 = por %p315, %p316
      %p319 = scmp.ne.s32.totalorder %s304, %s318
      %p320 = scmp.eq.s32.totalorder %s46, 0
      %p321 = por %p319, %p320
      %s323 = sadd.s32 %s322, 1
      %p326 = scmp.eq.s32.totalorder %s40, 1
      %p327 = scmp.ne.s32.totalorder %s322, %s324
      %p328 = scmp.eq.s32.totalorder %s40, 0
      %p329 = por %p327, %p328
      %p330 = scmp.ne.s32.totalorder %s322, %s324
      %p331 = scmp.eq.s32.totalorder %s45, 1
      %p332 = por %p330, %p331
      %p333 = scmp.ne.s32.totalorder %s324, %s325
      %p334 = scmp.eq.s32.totalorder %s45, 0
      %p335 = por %p333, %p334
      %p336 = scmp.ne.s32.totalorder %s324, %s325
      %p337 = scmp.eq.s32.totalorder %s46, 1
      %p338 = por %p336, %p337
      %p340 = scmp.ne.s32.totalorder %s325, %s339
      %p341 = scmp.eq.s32.totalorder %s46, 0
      %p342 = por %p340, %p341
      %s344 = sadd.s32 %s343, 1
      %p347 = scmp.eq.s32.totalorder %s40, 1
      %p348 = scmp.ne.s32.totalorder %s343, %s345
      %p349 = scmp.eq.s32.totalorder %s40, 0
      %p350 = por %p348, %p349
      %p351 = scmp.ne.s32.totalorder %s343, %s345
      %p352 = scmp.eq.s32.totalorder %s45, 1
      %p353 = por %p351, %p352
      %p354 = scmp.ne.s32.totalorder %s345, %s346
      %p355 = scmp.eq.s32.totalorder %s45, 0
      %p356 = por %p354, %p355
      %p357 = scmp.ne.s32.totalorder %s345, %s346
      %p358 = scmp.eq.s32.totalorder %s46, 1
      %p359 = por %p357, %p358
      %p361 = scmp.ne.s32.totalorder %s346, %s360
      %p362 = scmp.eq.s32.totalorder %s46, 0
      %p363 = por %p361, %p362
      %s364 = ssub.s32 %s47, %s59
      %s365 = ssub.s32 %s48, %s55
      %s366 = sor.u32 %s364, %s365
      %p367 = scmp.eq.s32.totalorder %s366, 0
      %s369 = sadd.s32 %s368, 1
      %s370 = scalar_select %p367, %s368, %s369
      %p373 = pneg %p367
      %p374 = scmp.eq.s32.totalorder %s40, 1
      %p375 = por %p373, %p374
      %p376 = scmp.ne.s32.totalorder %s368, %s371
      %p377 = scmp.eq.s32.totalorder %s40, 0
      %p378 = por %p376, %p377
      %p379 = scmp.ne.s32.totalorder %s368, %s371
      %p380 = scmp.eq.s32.totalorder %s45, 1
      %p381 = por %p379, %p380
      %p382 = scmp.ne.s32.totalorder %s371, %s372
      %p383 = scmp.eq.s32.totalorder %s45, 0
      %p384 = por %p382, %p383
      %p385 = scmp.ne.s32.totalorder %s371, %s372
      %p386 = scmp.eq.s32.totalorder %s46, 1
      %p387 = por %p385, %p386
      %p389 = scmp.ne.s32.totalorder %s372, %s388
      %p390 = scmp.eq.s32.totalorder %s46, 0
      %p391 = por %p389, %p390
      %s392 = ssub.s32 %s47, %s59
      %s393 = ssub.s32 %s48, %s55
      %s394 = sor.u32 %s392, %s393
      %p395 = scmp.eq.s32.totalorder %s394, 0
      %s397 = sadd.s32 %s396, 1
      %s398 = scalar_select %p395, %s396, %s397
      %p401 = pneg %p395
      %p402 = scmp.eq.s32.totalorder %s40, 1
      %p403 = por %p401, %p402
      %p404 = scmp.ne.s32.totalorder %s396, %s399
      %p405 = scmp.eq.s32.totalorder %s40, 0
      %p406 = por %p404, %p405
      %p407 = scmp.ne.s32.totalorder %s396, %s399
      %p408 = scmp.eq.s32.totalorder %s45, 1
      %p409 = por %p407, %p408
      %p410 = scmp.ne.s32.totalorder %s399, %s400
      %p411 = scmp.eq.s32.totalorder %s45, 0
      %p412 = por %p410, %p411
      %p413 = scmp.ne.s32.totalorder %s399, %s400
      %p414 = scmp.eq.s32.totalorder %s46, 1
      %p415 = por %p413, %p414
      %p417 = scmp.ne.s32.totalorder %s400, %s416
      %p418 = scmp.eq.s32.totalorder %s46, 0
      %p419 = por %p417, %p418
      %p420 = scmp.le.s32.totalorder 1, %s40
      %p421 = scmp.lt.s32.totalorder %s40, 3
      %p422 = pnand %p420, %p421
      %p423 = pneg %p422
      // Predicated region
      $region9: #{tpu_custom_call.1} parent=5 // pred_check
        _
      $region10: #{tpu_custom_call.1} parent=5 // pred_check_branch
        %425 = sbr.rel (%p422) target = $region12
      $region11: #{tpu_custom_call.1} parent=5 // pred_region
        %s426 = ssub.s32 %s40, 1
        // Predicated region
        $region13: #{tpu_custom_call.1} parent=11 // pred_check
          %p427 = pneg %p125
        $region14: #{tpu_custom_call.1} parent=11 // pred_check_branch
          %429 = sbr.rel (%p427) target = $region16
        $region15: #{tpu_custom_call.1} parent=11 // pred_region
          %s431 = ssub.s32 16, 16
          %432 = vsyncadd [#allocation6], %s431
          %s434 = sshll.u32 [#allocation7], 4
          %s435 = int_to_ptr.vmem [resolvable:$true] %s434
          %437 = dma.hbm_to_vmem [thread:$0]  %s2, 16, %s435, [#allocation6]
        $region16: #{tpu_custom_call.1} parent=11 // pred_fallthru
          _
        // Predicated region
        $region17: #{tpu_custom_call.1} parent=11 // pred_check
          %p438 = pneg %p146
        $region18: #{tpu_custom_call.1} parent=11 // pred_check_branch
          %440 = sbr.rel (%p438) target = $region20
        $region19: #{tpu_custom_call.1} parent=11 // pred_region
          %s442 = ssub.s32 16, 16
          %443 = vsyncadd [#allocation9], %s442
          %s445 = sshll.u32 [#allocation8], 4
          %s446 = int_to_ptr.vmem [resolvable:$true] %s445
          %448 = dma.hbm_to_vmem [thread:$0]  %s3, 16, %s446, [#allocation9]
        $region20: #{tpu_custom_call.1} parent=11 // pred_fallthru
          _
        // Predicated region
        $region21: #{tpu_custom_call.1} parent=11 // pred_check
          %p449 = pneg %p167
        $region22: #{tpu_custom_call.1} parent=11 // pred_check_branch
          %451 = sbr.rel (%p449) target = $region24
        $region23: #{tpu_custom_call.1} parent=11 // pred_region
          %s453 = ssub.s32 256, 256
          %454 = vsyncadd [#allocation9], %s453
          %s455 = sshll.u32 [#allocation10], 4
          %s456 = int_to_ptr.vmem [resolvable:$true] %s455
          %461 = dma.hbm_to_vmem [thread:$0]  %s4, 256, %s456, [#allocation9], 64, 64, 4
        $region24: #{tpu_custom_call.1} parent=11 // pred_fallthru
          _
        // Predicated region
        $region25: #{tpu_custom_call.1} parent=11 // pred_check
          %p462 = pneg %p188
        $region26: #{tpu_custom_call.1} parent=11 // pred_check_branch
          %464 = sbr.rel (%p462) target = $region28
        $region27: #{tpu_custom_call.1} parent=11 // pred_region
          %s466 = ssub.s32 16, 16
          %467 = vsyncadd [#allocation12], %s466
          %s469 = sshll.u32 [#allocation11], 4
          %s470 = int_to_ptr.vmem [resolvable:$true] %s469
          %472 = dma.hbm_to_vmem [thread:$0]  %s5, 16, %s470, [#allocation12]
        $region28: #{tpu_custom_call.1} parent=11 // pred_fallthru
          _
        // Predicated region
        $region29: #{tpu_custom_call.1} parent=11 // pred_check
          %p473 = pneg %p209
        $region30: #{tpu_custom_call.1} parent=11 // pred_check_branch
          %475 = sbr.rel (%p473) target = $region32
        $region31: #{tpu_custom_call.1} parent=11 // pred_region
          %s477 = ssub.s32 256, 256
          %478 = vsyncadd [#allocation12], %s477
          %s479 = sshll.u32 [#allocation13], 4
          %s480 = int_to_ptr.vmem [resolvable:$true] %s479
          %485 = dma.hbm_to_vmem [thread:$0]  %s6, 256, %s480, [#allocation12], 64, 64, 4
        $region32: #{tpu_custom_call.1} parent=11 // pred_fallthru
          _
        // Predicated region
        $region33: #{tpu_custom_call.1} parent=11 // pred_check
          %p486 = pneg %p230
        $region34: #{tpu_custom_call.1} parent=11 // pred_check_branch
          %488 = sbr.rel (%p486) target = $region36
        $region35: #{tpu_custom_call.1} parent=11 // pred_region
          %s490 = ssub.s32 16, 16
          %491 = vsyncadd [#allocation15], %s490
          %s493 = sshll.u32 [#allocation14], 4
          %s494 = int_to_ptr.vmem [resolvable:$true] %s493
          %496 = dma.hbm_to_vmem [thread:$0]  %s7, 16, %s494, [#allocation15]
        $region36: #{tpu_custom_call.1} parent=11 // pred_fallthru
          _
        // Predicated region
        $region37: #{tpu_custom_call.1} parent=11 // pred_check
          %p497 = pneg %p251
        $region38: #{tpu_custom_call.1} parent=11 // pred_check_branch
          %499 = sbr.rel (%p497) target = $region40
        $region39: #{tpu_custom_call.1} parent=11 // pred_region
          %s501 = ssub.s32 16, 16
          %502 = vsyncadd [#allocation15], %s501
          %s504 = sshll.u32 [#allocation16], 4
          %s505 = int_to_ptr.vmem [resolvable:$true] %s504
          %507 = dma.hbm_to_vmem [thread:$0]  %s8, 16, %s505, [#allocation15]
        $region40: #{tpu_custom_call.1} parent=11 // pred_fallthru
          _
        // Predicated region
        $region41: #{tpu_custom_call.1} parent=11 // pred_check
          %p508 = pneg %p272
        $region42: #{tpu_custom_call.1} parent=11 // pred_check_branch
          %510 = sbr.rel (%p508) target = $region44
        $region43: #{tpu_custom_call.1} parent=11 // pred_region
          %s512 = ssub.s32 16, 16
          %513 = vsyncadd [#allocation18], %s512
          %s515 = sshll.u32 [#allocation17], 4
          %s516 = int_to_ptr.vmem [resolvable:$true] %s515
          %518 = dma.hbm_to_vmem [thread:$0]  %s9, 16, %s516, [#allocation18]
        $region44: #{tpu_custom_call.1} parent=11 // pred_fallthru
          _
        // Predicated region
        $region45: #{tpu_custom_call.1} parent=11 // pred_check
          %p519 = pneg %p293
        $region46: #{tpu_custom_call.1} parent=11 // pred_check_branch
          %521 = sbr.rel (%p519) target = $region48
        $region47: #{tpu_custom_call.1} parent=11 // pred_region
          %s523 = ssub.s32 256, 256
          %524 = vsyncadd [#allocation18], %s523
          %s525 = sshll.u32 [#allocation19], 4
          %s526 = int_to_ptr.vmem [resolvable:$true] %s525
          %531 = dma.hbm_to_vmem [thread:$0]  %s10, 256, %s526, [#allocation18], 64, 64, 4
        $region48: #{tpu_custom_call.1} parent=11 // pred_fallthru
          _
        // Predicated region
        $region49: #{tpu_custom_call.1} parent=11 // pred_check
          %p532 = pneg %p314
        $region50: #{tpu_custom_call.1} parent=11 // pred_check_branch
          %534 = sbr.rel (%p532) target = $region52
        $region51: #{tpu_custom_call.1} parent=11 // pred_region
          %s536 = ssub.s32 16, 16
          %537 = vsyncadd [#allocation21], %s536
          %s539 = sshll.u32 [#allocation20], 4
          %s540 = int_to_ptr.vmem [resolvable:$true] %s539
          %542 = dma.hbm_to_vmem [thread:$0]  %s11, 16, %s540, [#allocation21]
        $region52: #{tpu_custom_call.1} parent=11 // pred_fallthru
          _
        // Predicated region
        $region53: #{tpu_custom_call.1} parent=11 // pred_check
          %p543 = pneg %p335
        $region54: #{tpu_custom_call.1} parent=11 // pred_check_branch
          %545 = sbr.rel (%p543) target = $region56
        $region55: #{tpu_custom_call.1} parent=11 // pred_region
          %s547 = ssub.s32 512, 512
          %548 = vsyncadd [#allocation21], %s547
          %s549 = sshll.u32 [#allocation22], 4
          %s550 = int_to_ptr.vmem [resolvable:$true] %s549
          %555 = dma.hbm_to_vmem [thread:$0]  %s12, 512, %s550, [#allocation21], 64, 64, 4
        $region56: #{tpu_custom_call.1} parent=11 // pred_fallthru
          _
        // Predicated region
        $region57: #{tpu_custom_call.1} parent=11 // pred_check
          %p556 = pneg %p356
        $region58: #{tpu_custom_call.1} parent=11 // pred_check_branch
          %558 = sbr.rel (%p556) target = $region60
        $region59: #{tpu_custom_call.1} parent=11 // pred_region
          %s560 = ssub.s32 16, 16
          %561 = vsyncadd [#allocation24], %s560
          %s563 = sshll.u32 [#allocation23], 4
          %s564 = int_to_ptr.vmem [resolvable:$true] %s563
          %566 = dma.hbm_to_vmem [thread:$0]  %s13, 16, %s564, [#allocation24]
        $region60: #{tpu_custom_call.1} parent=11 // pred_fallthru
          _
      $region12: #{tpu_custom_call.1} parent=5 // pred_fallthru
        _
      %p567 = scmp.lt.s32.totalorder %s40, 2
      // Predicated region
      $region61: #{tpu_custom_call.1} parent=5 // pred_check
        %p568 = pneg %p567
      $region62: #{tpu_custom_call.1} parent=5 // pred_check_branch
        %570 = sbr.rel (%p568) target = $region64
      $region63: #{tpu_custom_call.1} parent=5 // pred_region
        // Predicated region
        $region65: #{tpu_custom_call.1} parent=63 // pred_check
          %p571 = pneg %p72
        $region66: #{tpu_custom_call.1} parent=63 // pred_check_branch
          %573 = sbr.rel (%p571) target = $region68
        $region67: #{tpu_custom_call.1} parent=63 // pred_region
          %s574 = sand.u32 %s62, 1
          %s575 = scalar_lea.sflag [#allocation3], %s574
          %s576 = sand.u32 %s62, 1
          %s577 = smul.addr %s576, 16
          %s578 = scalar_lea.vmem [#allocation2], %s577
          %s580 = ssub.s32 256, 256
          %581 = vsyncadd %s575, %s580
          %s582 = smul.addr %s47, 2
          %s583 = smul.addr %s582, 128
          %s584 = scalar_lea.hbm %s0, %s583
          %s585 = sshll.u32 %s578, 4
          %s586 = int_to_ptr.vmem [resolvable:$true] %s585
          %591 = dma.hbm_to_vmem [thread:$0]  %s584, 256, %s586, %s575, 128, 128, 8
        $region68: #{tpu_custom_call.1} parent=63 // pred_fallthru
          _
        // Predicated region
        $region69: #{tpu_custom_call.1} parent=63 // pred_check
          %p592 = pneg %p98
        $region70: #{tpu_custom_call.1} parent=63 // pred_check_branch
          %594 = sbr.rel (%p592) target = $region72
        $region71: #{tpu_custom_call.1} parent=63 // pred_region
          %s595 = sand.u32 %s40, 1
          %s596 = scalar_lea.sflag [#allocation6], %s595
          %s597 = sand.u32 %s88, 1
          %s598 = scalar_lea.vmem [#allocation5], %s597
          %s600 = ssub.s32 16, 16
          %601 = vsyncadd %s596, %s600
          %s602 = smul.addr %s47, 16
          %s603 = scalar_lea.hbm %s1, %s602
          %s605 = sshll.u32 %s598, 4
          %s606 = int_to_ptr.vmem [resolvable:$true] %s605
          %608 = dma.hbm_to_vmem [thread:$0]  %s603, 16, %s606, %s596
        $region72: #{tpu_custom_call.1} parent=63 // pred_fallthru
          _
      $region64: #{tpu_custom_call.1} parent=5 // pred_fallthru
        _
      %p609 = scmp.le.s32.totalorder 1, %s40
      %p610 = scmp.lt.s32.totalorder %s40, 3
      %p611 = pnand %p609, %p610
      %p612 = pneg %p611
      // Predicated region
      $region73: #{tpu_custom_call.1} parent=5 // pred_check
        _
      $region74: #{tpu_custom_call.1} parent=5 // pred_check_branch
        %614 = sbr.rel (%p611) target = $region76
      $region75: #{tpu_custom_call.1} parent=5 // pred_region
        %s615 = ssub.s32 %s40, 1
        %s616 = sand.u32 %s65, 1
        %s617 = scalar_lea.sflag [#allocation3], %s616
        %s618 = sand.u32 %s65, 1
        %s619 = smul.addr %s618, 16
        %s620 = scalar_lea.vmem [#allocation2], %s619
        // Predicated region
        $region77: #{tpu_custom_call.1} parent=75 // pred_check
          %p621 = pneg %p78
        $region78: #{tpu_custom_call.1} parent=75 // pred_check_branch
          %623 = sbr.rel (%p621) target = $region80
        $region79: #{tpu_custom_call.1} parent=75 // pred_region
          %624 = dma.done %s617, 256
        $region80: #{tpu_custom_call.1} parent=75 // pred_fallthru
          _
        %s625 = sand.u32 %s45, 1
        %s626 = scalar_lea.sflag [#allocation6], %s625
        %s627 = sand.u32 %s91, 1
        %s628 = scalar_lea.vmem [#allocation5], %s627
        // Predicated region
        $region81: #{tpu_custom_call.1} parent=75 // pred_check
          %p629 = pneg %p104
        $region82: #{tpu_custom_call.1} parent=75 // pred_check_branch
          %631 = sbr.rel (%p629) target = $region84
        $region83: #{tpu_custom_call.1} parent=75 // pred_region
          %632 = dma.done %s626, 16
        $region84: #{tpu_custom_call.1} parent=75 // pred_fallthru
          _
        // Predicated region
        $region85: #{tpu_custom_call.1} parent=75 // pred_check
          %p633 = pneg %p125
        $region86: #{tpu_custom_call.1} parent=75 // pred_check_branch
          %635 = sbr.rel (%p633) target = $region88
        $region87: #{tpu_custom_call.1} parent=75 // pred_region
          %636 = dma.done [#allocation6], 16
        $region88: #{tpu_custom_call.1} parent=75 // pred_fallthru
          _
        // Predicated region
        $region89: #{tpu_custom_call.1} parent=75 // pred_check
          %p637 = pneg %p146
        $region90: #{tpu_custom_call.1} parent=75 // pred_check_branch
          %639 = sbr.rel (%p637) target = $region92
        $region91: #{tpu_custom_call.1} parent=75 // pred_region
          %640 = dma.done [#allocation9], 16
        $region92: #{tpu_custom_call.1} parent=75 // pred_fallthru
          _
        // Predicated region
        $region93: #{tpu_custom_call.1} parent=75 // pred_check
          %p641 = pneg %p167
        $region94: #{tpu_custom_call.1} parent=75 // pred_check_branch
          %643 = sbr.rel (%p641) target = $region96
        $region95: #{tpu_custom_call.1} parent=75 // pred_region
          %644 = dma.done [#allocation9], 256
        $region96: #{tpu_custom_call.1} parent=75 // pred_fallthru
          _
        // Predicated region
        $region97: #{tpu_custom_call.1} parent=75 // pred_check
          %p645 = pneg %p188
        $region98: #{tpu_custom_call.1} parent=75 // pred_check_branch
          %647 = sbr.rel (%p645) target = $region100
        $region99: #{tpu_custom_call.1} parent=75 // pred_region
          %648 = dma.done [#allocation12], 16
        $region100: #{tpu_custom_call.1} parent=75 // pred_fallthru
          _
        // Predicated region
        $region101: #{tpu_custom_call.1} parent=75 // pred_check
          %p649 = pneg %p209
        $region102: #{tpu_custom_call.1} parent=75 // pred_check_branch
          %651 = sbr.rel (%p649) target = $region104
        $region103: #{tpu_custom_call.1} parent=75 // pred_region
          %652 = dma.done [#allocation12], 256
        $region104: #{tpu_custom_call.1} parent=75 // pred_fallthru
          _
        // Predicated region
        $region105: #{tpu_custom_call.1} parent=75 // pred_check
          %p653 = pneg %p230
        $region106: #{tpu_custom_call.1} parent=75 // pred_check_branch
          %655 = sbr.rel (%p653) target = $region108
        $region107: #{tpu_custom_call.1} parent=75 // pred_region
          %656 = dma.done [#allocation15], 16
        $region108: #{tpu_custom_call.1} parent=75 // pred_fallthru
          _
        // Predicated region
        $region109: #{tpu_custom_call.1} parent=75 // pred_check
          %p657 = pneg %p251
        $region110: #{tpu_custom_call.1} parent=75 // pred_check_branch
          %659 = sbr.rel (%p657) target = $region112
        $region111: #{tpu_custom_call.1} parent=75 // pred_region
          %660 = dma.done [#allocation15], 16
        $region112: #{tpu_custom_call.1} parent=75 // pred_fallthru
          _
        // Predicated region
        $region113: #{tpu_custom_call.1} parent=75 // pred_check
          %p661 = pneg %p272
        $region114: #{tpu_custom_call.1} parent=75 // pred_check_branch
          %663 = sbr.rel (%p661) target = $region116
        $region115: #{tpu_custom_call.1} parent=75 // pred_region
          %664 = dma.done [#allocation18], 16
        $region116: #{tpu_custom_call.1} parent=75 // pred_fallthru
          _
        // Predicated region
        $region117: #{tpu_custom_call.1} parent=75 // pred_check
          %p665 = pneg %p293
        $region118: #{tpu_custom_call.1} parent=75 // pred_check_branch
          %667 = sbr.rel (%p665) target = $region120
        $region119: #{tpu_custom_call.1} parent=75 // pred_region
          %668 = dma.done [#allocation18], 256
        $region120: #{tpu_custom_call.1} parent=75 // pred_fallthru
          _
        // Predicated region
        $region121: #{tpu_custom_call.1} parent=75 // pred_check
          %p669 = pneg %p314
        $region122: #{tpu_custom_call.1} parent=75 // pred_check_branch
          %671 = sbr.rel (%p669) target = $region124
        $region123: #{tpu_custom_call.1} parent=75 // pred_region
          %672 = dma.done [#allocation21], 16
        $region124: #{tpu_custom_call.1} parent=75 // pred_fallthru
          _
        // Predicated region
        $region125: #{tpu_custom_call.1} parent=75 // pred_check
          %p673 = pneg %p335
        $region126: #{tpu_custom_call.1} parent=75 // pred_check_branch
          %675 = sbr.rel (%p673) target = $region128
        $region127: #{tpu_custom_call.1} parent=75 // pred_region
          %676 = dma.done [#allocation21], 512
        $region128: #{tpu_custom_call.1} parent=75 // pred_fallthru
          _
        // Predicated region
        $region129: #{tpu_custom_call.1} parent=75 // pred_check
          %p677 = pneg %p356
        $region130: #{tpu_custom_call.1} parent=75 // pred_check_branch
          %679 = sbr.rel (%p677) target = $region132
        $region131: #{tpu_custom_call.1} parent=75 // pred_region
          %680 = dma.done [#allocation24], 16
        $region132: #{tpu_custom_call.1} parent=75 // pred_fallthru
          _
        %s681 = sand.u32 %s65, 1
        %s682 = scalar_lea.sflag [#allocation3], %s681
        %s683 = sand.u32 %s65, 1
        %s684 = smul.addr %s683, 16
        %s685 = scalar_lea.vmem [#allocation2], %s684
        %p686 = pneg %p78
        %p687 = pneg %p75
        %s688 = sand.u32 %s45, 1
        %s689 = scalar_lea.sflag [#allocation6], %s688
        %s690 = sand.u32 %s91, 1
        %s691 = scalar_lea.vmem [#allocation5], %s690
        %p692 = pneg %p104
        %p693 = pneg %p101
        %p694 = pneg %p125
        %p695 = pneg %p122
        %p696 = pneg %p146
        %p697 = pneg %p143
        %p698 = pneg %p167
        %p699 = pneg %p164
        %p700 = pneg %p188
        %p701 = pneg %p185
        %p702 = pneg %p209
        %p703 = pneg %p206
        %p704 = pneg %p230
        %p705 = pneg %p227
        %p706 = pneg %p251
        %p707 = pneg %p248
        %p708 = pneg %p272
        %p709 = pneg %p269
        %p710 = pneg %p293
        %p711 = pneg %p290
        %p712 = pneg %p314
        %p713 = pneg %p311
        %p714 = pneg %p335
        %p715 = pneg %p332
        %p716 = pneg %p356
        %p717 = pneg %p353
        %p718 = pneg %p384
        %p719 = pneg %p381
        %s720 = sand.u32 %s371, 1
        %s721 = scalar_lea.sflag [#allocation4], %s720
        %s722 = sand.u32 %s371, 1
        %s723 = smul.addr %s722, 16
        %s724 = scalar_lea.vmem [#allocation25], %s723
        %p725 = pneg %p412
        %p726 = pneg %p409
        %s727 = sand.u32 %s399, 1
        %s728 = scalar_lea.sflag [#allocation27], %s727
        %s729 = sand.u32 %s399, 1
        %s730 = smul.addr %s729, 16
        %s731 = scalar_lea.vmem [#allocation26], %s730
        %s732 = smul.u32 2, %s50
        %s733 = smul.u32 2, %s50
        %v735 = vld [vmem:[%s620] sm:$0xff]
        %v736 = vld [vmem:[%s620 + $0x8] sm:$0xff]
        %v737 = vld [vmem:[%s628] sm:$0x1]
        %v738 = vld [vmem:[#allocation7] sm:$0x1]
        %v739 = vld [vmem:[#allocation8] sm:$0x1]
        %vm740 = vcmask 261120
        %v741 = vsel %vm740, %v735, 0.0
        %742 = vadd.xlane.f32.xlu0 %v741
        %v743 = vpop.xlane.xlu0 %742
        %v744 = vsel %vm740, %v736, 0.0
        %745 = vadd.xlane.f32.xlu0 %v744
        %v746 = vpop.xlane.xlu0 %745
        %v747 = vrcp.pop 32.0
        %v748 = vmul.f32 %v743, %v747
        %v749 = vmul.f32 %v746, %v747
        %v750 = vsub.f32 %v735, %v748
        %v751 = vsub.f32 %v736, %v749
        %v752 = vmul.f32 %v750, %v750
        %v753 = vmul.f32 %v751, %v751
        %v754 = vsel %vm740, %v752, 0.0
        %755 = vadd.xlane.f32.xlu0 %v754
        %v756 = vpop.xlane.xlu0 %755
        %v757 = vsel %vm740, %v753, 0.0
        %758 = vadd.xlane.f32.xlu0 %v757
        %v759 = vpop.xlane.xlu0 %758
        %v760 = vmul.f32 %v756, %v747
        %v761 = vmul.f32 %v759, %v747
        %v762 = vadd.f32 %v760, 1e-05
        %v763 = vadd.f32 %v761, 1e-05
        %v764 = vrsqrt.pop %v762
        %v765 = vrsqrt.pop %v763
        %v766 = vmul.f32 %v750, %v764
        %v767 = vmul.f32 %v751, %v765
        %v769 = vlaneseq
        %v770 = vshrl.u32 %v769, 7
        %v771 = vsub.s32 0, %v770
        %v772 = vrot.slane %v738, %v771
        %v774 = vmul.f32 %v766, %v772
        %v775 = vmul.f32 %v767, %v772
        %v777 = vlaneseq
        %v778 = vshrl.u32 %v777, 7
        %v779 = vsub.s32 0, %v778
        %v780 = vrot.slane %v739, %v779
        %v782 = vadd.f32 %v774, %v780
        %v783 = vadd.f32 %v775, %v780
        %v784 = vpack.c.bf16 %v783, %v782
        %v785 = vld [vmem:[#allocation10] sm:$0xf]
        %v786 = vld [vmem:[#allocation10 + $0x4] sm:$0xf]
        %v787 = vld [vmem:[#allocation10 + $0x8] sm:$0xf]
        %v788 = vld [vmem:[#allocation10 + $0xc] sm:$0xf]
        %v789 = vld [vmem:[#allocation11] sm:$0x1]
        %v791 = vlaneseq
        %v792 = vshrl.u32 %v791, 7
        %v793 = vsub.s32 0, %v792
        %v794 = vrot.slane %v789, %v793
        %v800 = vunpack.c.l.b16 %v785
        %v801 = vunpack.c.l.b16 %v786
        %v802 = vunpack.c.l.b16 %v787
        %v803 = vunpack.c.l.b16 %v788
        %v804 = vpack.c.b16 %v801, %v800
        %v805 = vpack.c.b16 %v803, %v802
        %v809 = vsel %vm740, %v784, 0
        %811 = vmatprep.subr.bf16.mxu0 0
        %812 = vmatpush1.bf16.msra.mxu0 %v804
        %813 = vmatprep.subr.bf16.mxu0 0
        %814 = vmatpush1.bf16.msra.mxu0 %v805
        %815 = vmatprep.subr.bf16.mxu0 0
        %816 = vmatpush1.bf16.msra.mxu0 0
        %817 = vmatprep.subr.bf16.mxu0 0
        %818 = vmatpush1.bf16.msra.mxu0 0
        %819 = vmatprep.subr.bf16.mxu0 0
        %820 = vmatpush1.bf16.msra.mxu0 0
        %821 = vmatprep.subr.bf16.mxu0 0
        %822 = vmatpush1.bf16.msra.mxu0 0
        %823 = vmatprep.subr.bf16.mxu0 0
        %824 = vmatpush1.bf16.msra.mxu0 0
        %825 = vmatprep.subr.bf16.mxu0 0
        %826 = vmatpush1.bf16.msra.mxu0 0
        %827 = vmatprep.subr.bf16.mxu0 0
        %828 = vmatpush1.bf16.msra.mxu0 0
        %829 = vmatprep.subr.bf16.mxu0 0
        %830 = vmatpush1.bf16.msra.mxu0 0
        %831 = vmatprep.subr.bf16.mxu0 0
        %832 = vmatpush1.bf16.msra.mxu0 0
        %833 = vmatprep.subr.bf16.mxu0 0
        %834 = vmatpush1.bf16.msra.mxu0 0
        %835 = vmatprep.subr.bf16.mxu0 0
        %836 = vmatpush1.bf16.msra.mxu0 0
        %837 = vmatprep.subr.bf16.mxu0 0
        %838 = vmatpush1.bf16.msra.mxu0 0
        %839 = vmatprep.subr.bf16.mxu0 0
        %840 = vmatpush1.bf16.msra.mxu0 0
        %841 = vmatprep.subr.bf16.mxu0 0
        %842 = vmatpush1.bf16.msra.mxu0 0
        %843 = vmatprep.mubr.bf16.mxu0 0
        %844 = vmatmul.mubr.bf16.gmra.mrb[0].mxu0 %v809
        %v845 = vpop.f32.mrb[0].mxu0
        %v846 = vadd.f32 %v794, %v845
        %v847 = vpop.f32.mrb[0].mxu0
        %v848 = vpop.f32.mrb[0].mxu0
        %v849 = vadd.f32 %v794, %v848
        %v850 = vpop.f32.mrb[0].mxu0
        %851 = vdwg.mxu0
        %v852 = vmul.f32 %v846, 0.17677669
        %v853 = vmul.f32 %v849, 0.17677669
        %v854 = vpack.c.bf16 %v853, %v852
        %v855 = vpack.c.bf16 %v849, %v846
        %v857 = vlaneseq
        %v858 = vshrl.u32 %v857, 7
        %v859 = vsub.s32 0, %v858
        %v860 = vrot.slane %v737, %v859
        %863 = vrot.lane.b32.xlu0 %v855, 96
        %v864 = vpop.permute.xlu0 %863
        %v866 = vsel %vm740, %v854, 0
        %v869 = vsel %vm740, %v864, 0
        %871 = vmatprep.subr.bf16.mxu0 0
        %872 = vmatpush1.bf16.xpose.msra.mxu0 %v869
        %873 = vmatprep.subr.bf16.mxu0 0
        %874 = vmatpush1.bf16.xpose.msra.mxu0 0
        %875 = vmatprep.subr.bf16.mxu0 0
        %876 = vmatpush1.bf16.xpose.msra.mxu0 0
        %877 = vmatprep.subr.bf16.mxu0 0
        %878 = vmatpush1.bf16.xpose.msra.mxu0 0
        %879 = vmatprep.subr.bf16.mxu0 0
        %880 = vmatpush1.bf16.xpose.msra.mxu0 0
        %881 = vmatprep.subr.bf16.mxu0 0
        %882 = vmatpush1.bf16.xpose.msra.mxu0 0
        %883 = vmatprep.subr.bf16.mxu0 0
        %884 = vmatpush1.bf16.xpose.msra.mxu0 0
        %885 = vmatprep.subr.bf16.mxu0 0
        %886 = vmatpush1.bf16.xpose.msra.mxu0 0
        %887 = vmatprep.subr.bf16.mxu0 0
        %888 = vmatpush1.bf16.xpose.msra.mxu0 0
        %889 = vmatprep.subr.bf16.mxu0 0
        %890 = vmatpush1.bf16.xpose.msra.mxu0 0
        %891 = vmatprep.subr.bf16.mxu0 0
        %892 = vmatpush1.bf16.xpose.msra.mxu0 0
        %893 = vmatprep.subr.bf16.mxu0 0
        %894 = vmatpush1.bf16.xpose.msra.mxu0 0
        %895 = vmatprep.subr.bf16.mxu0 0
        %896 = vmatpush1.bf16.xpose.msra.mxu0 0
        %897 = vmatprep.subr.bf16.mxu0 0
        %898 = vmatpush1.bf16.xpose.msra.mxu0 0
        %899 = vmatprep.subr.bf16.mxu0 0
        %900 = vmatpush1.bf16.xpose.msra.mxu0 0
        %901 = vmatprep.subr.bf16.mxu0 0
        %902 = vmatpush1.bf16.xpose.msra.mxu0 0
        %903 = vmatprep.mubr.bf16.mxu0 0
        %904 = vmatmul.mubr.bf16.gmra.mrb[0].mxu0 %v866
        %v905 = vpop.f32.mrb[0].mxu0
        %v906 = vadd.f32 %v860, %v905
        %v907 = vpop.f32.mrb[0].mxu0
        %v908 = vpop.f32.mrb[0].mxu0
        %v909 = vadd.f32 %v860, %v908
        %v910 = vpop.f32.mrb[0].mxu0
        %911 = vdwg.mxu0
        %vm912 = vcmask 130048
        %v913 = vsel %vm912, %v906, -inf
        %914 = vmax.xlane.f32.xlu0 %v913
        %v915 = vpop.xlane.xlu0 %914
        %v916 = vsel %vm912, %v909, -inf
        %917 = vmax.xlane.f32.xlu0 %v916
        %v918 = vpop.xlane.xlu0 %917
        %v919 = vsub.f32 %v906, %v915
        %v920 = vsub.f32 %v909, %v918
        %v921 = vmul.f32 %v919, 1.442695
        %v922 = vpow.pop %v921
        %v923 = vmul.f32 %v920, 1.442695
        %v924 = vpow.pop %v923
        %v925 = vsel %vm912, %v922, 0.0
        %926 = vadd.xlane.f32.xlu0 %v925
        %v927 = vpop.xlane.xlu0 %926
        %v928 = vsel %vm912, %v924, 0.0
        %929 = vadd.xlane.f32.xlu0 %v928
        %v930 = vpop.xlane.xlu0 %929
        %v931 = vrcp.pop %v927
        %v932 = vrcp.pop %v930
        %v933 = vmul.f32 %v922, %v931
        %v934 = vmul.f32 %v924, %v932
        %935 = vst.msk [vmem:[%s731] sm:$0xff] %vm912, %v933
        %936 = vst.msk [vmem:[%s731 + $0x8] sm:$0xff] %vm912, %v934
        %v937 = vpack.c.bf16 %v934, %v933
        %938 = vrot.lane.b32.xlu0 %v855, 64
        %v939 = vpop.permute.xlu0 %938
        %v942 = vsel %vm912, %v937, 0
        %944 = vmatprep.subr.bf16.mxu0 0
        %945 = vmatpush1.bf16.msra.mxu0 %v939
        %946 = vmatprep.subr.bf16.mxu0 0
        %947 = vmatpush1.bf16.msra.mxu0 0
        %948 = vmatprep.subr.bf16.mxu0 0
        %949 = vmatpush1.bf16.msra.mxu0 0
        %950 = vmatprep.subr.bf16.mxu0 0
        %951 = vmatpush1.bf16.msra.mxu0 0
        %952 = vmatprep.subr.bf16.mxu0 0
        %953 = vmatpush1.bf16.msra.mxu0 0
        %954 = vmatprep.subr.bf16.mxu0 0
        %955 = vmatpush1.bf16.msra.mxu0 0
        %956 = vmatprep.subr.bf16.mxu0 0
        %957 = vmatpush1.bf16.msra.mxu0 0
        %958 = vmatprep.subr.bf16.mxu0 0
        %959 = vmatpush1.bf16.msra.mxu0 0
        %960 = vmatprep.subr.bf16.mxu0 0
        %961 = vmatpush1.bf16.msra.mxu0 0
        %962 = vmatprep.subr.bf16.mxu0 0
        %963 = vmatpush1.bf16.msra.mxu0 0
        %964 = vmatprep.subr.bf16.mxu0 0
        %965 = vmatpush1.bf16.msra.mxu0 0
        %966 = vmatprep.subr.bf16.mxu0 0
        %967 = vmatpush1.bf16.msra.mxu0 0
        %968 = vmatprep.subr.bf16.mxu0 0
        %969 = vmatpush1.bf16.msra.mxu0 0
        %970 = vmatprep.subr.bf16.mxu0 0
        %971 = vmatpush1.bf16.msra.mxu0 0
        %972 = vmatprep.subr.bf16.mxu0 0
        %973 = vmatpush1.bf16.msra.mxu0 0
        %974 = vmatprep.subr.bf16.mxu0 0
        %975 = vmatpush1.bf16.msra.mxu0 0
        %976 = vmatprep.mubr.bf16.mxu0 0
        %977 = vmatmul.mubr.bf16.gmra.mrb[0].mxu0 %v942
        %v978 = vpop.f32.mrb[0].mxu0
        %v979 = vadd.f32 0.0, %v978
        %v980 = vpop.f32.mrb[0].mxu0
        %v981 = vpop.f32.mrb[0].mxu0
        %v982 = vadd.f32 0.0, %v981
        %v983 = vpop.f32.mrb[0].mxu0
        %984 = vdwg.mxu0
        %v985 = vpack.c.bf16 %v982, %v979
        %v986 = vld [vmem:[#allocation13] sm:$0xf]
        %v987 = vld [vmem:[#allocation13 + $0x4] sm:$0xf]
        %v988 = vld [vmem:[#allocation13 + $0x8] sm:$0xf]
        %v989 = vld [vmem:[#allocation13 + $0xc] sm:$0xf]
        %v990 = vld [vmem:[#allocation14] sm:$0x1]
        %v992 = vlaneseq
        %v993 = vshrl.u32 %v992, 7
        %v994 = vsub.s32 0, %v993
        %v995 = vrot.slane %v990, %v994
        %v1001 = vunpack.c.l.b16 %v986
        %v1002 = vunpack.c.l.b16 %v987
        %v1003 = vunpack.c.l.b16 %v988
        %v1004 = vunpack.c.l.b16 %v989
        %v1005 = vpack.c.b16 %v1002, %v1001
        %v1006 = vpack.c.b16 %v1004, %v1003
        %v1010 = vsel %vm740, %v985, 0
        %1012 = vmatprep.subr.bf16.mxu0 0
        %1013 = vmatpush1.bf16.msra.mxu0 %v1005
        %1014 = vmatprep.subr.bf16.mxu0 0
        %1015 = vmatpush1.bf16.msra.mxu0 %v1006
        %1016 = vmatprep.subr.bf16.mxu0 0
        %1017 = vmatpush1.bf16.msra.mxu0 0
        %1018 = vmatprep.subr.bf16.mxu0 0
        %1019 = vmatpush1.bf16.msra.mxu0 0
        %1020 = vmatprep.subr.bf16.mxu0 0
        %1021 = vmatpush1.bf16.msra.mxu0 0
        %1022 = vmatprep.subr.bf16.mxu0 0
        %1023 = vmatpush1.bf16.msra.mxu0 0
        %1024 = vmatprep.subr.bf16.mxu0 0
        %1025 = vmatpush1.bf16.msra.mxu0 0
        %1026 = vmatprep.subr.bf16.mxu0 0
        %1027 = vmatpush1.bf16.msra.mxu0 0
        %1028 = vmatprep.subr.bf16.mxu0 0
        %1029 = vmatpush1.bf16.msra.mxu0 0
        %1030 = vmatprep.subr.bf16.mxu0 0
        %1031 = vmatpush1.bf16.msra.mxu0 0
        %1032 = vmatprep.subr.bf16.mxu0 0
        %1033 = vmatpush1.bf16.msra.mxu0 0
        %1034 = vmatprep.subr.bf16.mxu0 0
        %1035 = vmatpush1.bf16.msra.mxu0 0
        %1036 = vmatprep.subr.bf16.mxu0 0
        %1037 = vmatpush1.bf16.msra.mxu0 0
        %1038 = vmatprep.subr.bf16.mxu0 0
        %1039 = vmatpush1.bf16.msra.mxu0 0
        %1040 = vmatprep.subr.bf16.mxu0 0
        %1041 = vmatpush1.bf16.msra.mxu0 0
        %1042 = vmatprep.subr.bf16.mxu0 0
        %1043 = vmatpush1.bf16.msra.mxu0 0
        %1044 = vmatprep.mubr.bf16.mxu0 0
        %1045 = vmatmul.mubr.bf16.gmra.mrb[0].mxu0 %v1010
        %v1046 = vpop.f32.mrb[0].mxu0
        %v1047 = vadd.f32 %v995, %v1046
        %v1048 = vpop.f32.mrb[0].mxu0
        %v1049 = vpop.f32.mrb[0].mxu0
        %v1050 = vadd.f32 %v995, %v1049
        %v1051 = vpop.f32.mrb[0].mxu0
        %1052 = vdwg.mxu0
        %v1053 = vadd.f32 %v735, %v1047
        %v1054 = vadd.f32 %v736, %v1050
        %v1055 = vld [vmem:[#allocation16] sm:$0x1]
        %v1056 = vld [vmem:[#allocation17] sm:$0x1]
        %v1057 = vsel %vm740, %v1053, 0.0
        %1058 = vadd.xlane.f32.xlu0 %v1057
        %v1059 = vpop.xlane.xlu0 %1058
        %v1060 = vsel %vm740, %v1054, 0.0
        %1061 = vadd.xlane.f32.xlu0 %v1060
        %v1062 = vpop.xlane.xlu0 %1061
        %v1063 = vmul.f32 %v1059, %v747
        %v1064 = vmul.f32 %v1062, %v747
        %v1065 = vsub.f32 %v1053, %v1063
        %v1066 = vsub.f32 %v1054, %v1064
        %v1067 = vmul.f32 %v1065, %v1065
        %v1068 = vmul.f32 %v1066, %v1066
        %v1069 = vsel %vm740, %v1067, 0.0
        %1070 = vadd.xlane.f32.xlu0 %v1069
        %v1071 = vpop.xlane.xlu0 %1070
        %v1072 = vsel %vm740, %v1068, 0.0
        %1073 = vadd.xlane.f32.xlu0 %v1072
        %v1074 = vpop.xlane.xlu0 %1073
        %v1075 = vmul.f32 %v1071, %v747
        %v1076 = vmul.f32 %v1074, %v747
        %v1077 = vadd.f32 %v1075, 1e-05
        %v1078 = vadd.f32 %v1076, 1e-05
        %v1079 = vrsqrt.pop %v1077
        %v1080 = vrsqrt.pop %v1078
        %v1081 = vmul.f32 %v1065, %v1079
        %v1082 = vmul.f32 %v1066, %v1080
        %v1084 = vlaneseq
        %v1085 = vshrl.u32 %v1084, 7
        %v1086 = vsub.s32 0, %v1085
        %v1087 = vrot.slane %v1055, %v1086
        %v1089 = vmul.f32 %v1081, %v1087
        %v1090 = vmul.f32 %v1082, %v1087
        %v1092 = vlaneseq
        %v1093 = vshrl.u32 %v1092, 7
        %v1094 = vsub.s32 0, %v1093
        %v1095 = vrot.slane %v1056, %v1094
        %v1097 = vadd.f32 %v1089, %v1095
        %v1098 = vadd.f32 %v1090, %v1095
        %v1099 = vpack.c.bf16 %v1098, %v1097
        %v1100 = vld [vmem:[#allocation19] sm:$0xf]
        %v1101 = vld [vmem:[#allocation19 + $0x4] sm:$0xf]
        %v1102 = vld [vmem:[#allocation19 + $0x8] sm:$0xf]
        %v1103 = vld [vmem:[#allocation19 + $0xc] sm:$0xf]
        %v1104 = vld [vmem:[#allocation20] sm:$0x1]
        %v1106 = vlaneseq
        %v1107 = vshrl.u32 %v1106, 7
        %v1108 = vsub.s32 0, %v1107
        %v1109 = vrot.slane %v1104, %v1108
        %v1115 = vunpack.c.l.b16 %v1100
        %v1116 = vunpack.c.l.b16 %v1101
        %v1117 = vunpack.c.l.b16 %v1102
        %v1118 = vunpack.c.l.b16 %v1103
        %v1119 = vpack.c.b16 %v1116, %v1115
        %v1120 = vpack.c.b16 %v1118, %v1117
        %v1124 = vsel %vm740, %v1099, 0
        %1126 = vmatprep.subr.bf16.mxu0 0
        %1127 = vmatpush1.bf16.msra.mxu0 %v1119
        %1128 = vmatprep.subr.bf16.mxu0 0
        %1129 = vmatpush1.bf16.msra.mxu0 %v1120
        %1130 = vmatprep.subr.bf16.mxu0 0
        %1131 = vmatpush1.bf16.msra.mxu0 0
        %1132 = vmatprep.subr.bf16.mxu0 0
        %1133 = vmatpush1.bf16.msra.mxu0 0
        %1134 = vmatprep.subr.bf16.mxu0 0
        %1135 = vmatpush1.bf16.msra.mxu0 0
        %1136 = vmatprep.subr.bf16.mxu0 0
        %1137 = vmatpush1.bf16.msra.mxu0 0
        %1138 = vmatprep.subr.bf16.mxu0 0
        %1139 = vmatpush1.bf16.msra.mxu0 0
        %1140 = vmatprep.subr.bf16.mxu0 0
        %1141 = vmatpush1.bf16.msra.mxu0 0
        %1142 = vmatprep.subr.bf16.mxu0 0
        %1143 = vmatpush1.bf16.msra.mxu0 0
        %1144 = vmatprep.subr.bf16.mxu0 0
        %1145 = vmatpush1.bf16.msra.mxu0 0
        %1146 = vmatprep.subr.bf16.mxu0 0
        %1147 = vmatpush1.bf16.msra.mxu0 0
        %1148 = vmatprep.subr.bf16.mxu0 0
        %1149 = vmatpush1.bf16.msra.mxu0 0
        %1150 = vmatprep.subr.bf16.mxu0 0
        %1151 = vmatpush1.bf16.msra.mxu0 0
        %1152 = vmatprep.subr.bf16.mxu0 0
        %1153 = vmatpush1.bf16.msra.mxu0 0
        %1154 = vmatprep.subr.bf16.mxu0 0
        %1155 = vmatpush1.bf16.msra.mxu0 0
        %1156 = vmatprep.subr.bf16.mxu0 0
        %1157 = vmatpush1.bf16.msra.mxu0 0
        %1158 = vmatprep.mubr.bf16.mxu0 0
        %1159 = vmatmul.mubr.bf16.gmra.mrb[0].mxu0 %v1124
        %v1160 = vpop.f32.mrb[0].mxu0
        %v1161 = vadd.f32 %v1109, %v1160
        %v1162 = vpop.f32.mrb[0].mxu0
        %v1163 = vpop.f32.mrb[0].mxu0
        %v1164 = vadd.f32 %v1109, %v1163
        %v1165 = vpop.f32.mrb[0].mxu0
        %1166 = vdwg.mxu0
        %v1167 = vmax.f32 %v1161, 0.0
        %v1168 = vmax.f32 %v1164, 0.0
        %v1169 = vpack.c.bf16 %v1168, %v1167
        %v1170 = vld [vmem:[#allocation22] sm:$0xf]
        %v1171 = vld [vmem:[#allocation22 + $0x4] sm:$0xf]
        %v1172 = vld [vmem:[#allocation22 + $0x8] sm:$0xf]
        %v1173 = vld [vmem:[#allocation22 + $0xc] sm:$0xf]
        %v1174 = vld [vmem:[#allocation22 + $0x10] sm:$0xf]
        %v1175 = vld [vmem:[#allocation22 + $0x14] sm:$0xf]
        %v1176 = vld [vmem:[#allocation22 + $0x18] sm:$0xf]
        %v1177 = vld [vmem:[#allocation22 + $0x1c] sm:$0xf]
        %v1178 = vld [vmem:[#allocation23] sm:$0x1]
        %v1180 = vlaneseq
        %v1181 = vshrl.u32 %v1180, 7
        %v1182 = vsub.s32 0, %v1181
        %v1183 = vrot.slane %v1178, %v1182
        %v1193 = vunpack.c.l.b16 %v1170
        %v1194 = vunpack.c.l.b16 %v1171
        %v1195 = vunpack.c.l.b16 %v1172
        %v1196 = vunpack.c.l.b16 %v1173
        %v1197 = vunpack.c.l.b16 %v1174
        %v1198 = vunpack.c.l.b16 %v1175
        %v1199 = vunpack.c.l.b16 %v1176
        %v1200 = vunpack.c.l.b16 %v1177
        %v1201 = vpack.c.b16 %v1194, %v1193
        %v1202 = vpack.c.b16 %v1196, %v1195
        %v1203 = vpack.c.b16 %v1198, %v1197
        %v1204 = vpack.c.b16 %v1200, %v1199
        %vm1209 = vcmask 523264
        %v1211 = vsel %vm1209, %v1169, 0
        %1213 = vmatprep.subr.bf16.mxu0 0
        %1214 = vmatpush1.bf16.msra.mxu0 %v1201
        %1215 = vmatprep.subr.bf16.mxu0 0
        %1216 = vmatpush1.bf16.msra.mxu0 %v1202
        %1217 = vmatprep.subr.bf16.mxu0 0
        %1218 = vmatpush1.bf16.msra.mxu0 %v1203
        %1219 = vmatprep.subr.bf16.mxu0 0
        %1220 = vmatpush1.bf16.msra.mxu0 %v1204
        %1221 = vmatprep.subr.bf16.mxu0 0
        %1222 = vmatpush1.bf16.msra.mxu0 0
        %1223 = vmatprep.subr.bf16.mxu0 0
        %1224 = vmatpush1.bf16.msra.mxu0 0
        %1225 = vmatprep.subr.bf16.mxu0 0
        %1226 = vmatpush1.bf16.msra.mxu0 0
        %1227 = vmatprep.subr.bf16.mxu0 0
        %1228 = vmatpush1.bf16.msra.mxu0 0
        %1229 = vmatprep.subr.bf16.mxu0 0
        %1230 = vmatpush1.bf16.msra.mxu0 0
        %1231 = vmatprep.subr.bf16.mxu0 0
        %1232 = vmatpush1.bf16.msra.mxu0 0
        %1233 = vmatprep.subr.bf16.mxu0 0
        %1234 = vmatpush1.bf16.msra.mxu0 0
        %1235 = vmatprep.subr.bf16.mxu0 0
        %1236 = vmatpush1.bf16.msra.mxu0 0
        %1237 = vmatprep.subr.bf16.mxu0 0
        %1238 = vmatpush1.bf16.msra.mxu0 0
        %1239 = vmatprep.subr.bf16.mxu0 0
        %1240 = vmatpush1.bf16.msra.mxu0 0
        %1241 = vmatprep.subr.bf16.mxu0 0
        %1242 = vmatpush1.bf16.msra.mxu0 0
        %1243 = vmatprep.subr.bf16.mxu0 0
        %1244 = vmatpush1.bf16.msra.mxu0 0
        %1245 = vmatprep.mubr.bf16.mxu0 0
        %1246 = vmatmul.mubr.bf16.gmra.mrb[0].mxu0 %v1211
        %v1247 = vpop.f32.mrb[0].mxu0
        %v1248 = vadd.f32 %v1183, %v1247
        %v1249 = vpop.f32.mrb[0].mxu0
        %v1250 = vpop.f32.mrb[0].mxu0
        %v1251 = vadd.f32 %v1183, %v1250
        %v1252 = vpop.f32.mrb[0].mxu0
        %1253 = vdwg.mxu0
        %v1254 = vadd.f32 %v1053, %v1248
        %v1255 = vadd.f32 %v1054, %v1251
        %1256 = vst.msk [vmem:[%s724] sm:$0xff] %vm740, %v1254
        %1257 = vst.msk [vmem:[%s724 + $0x8] sm:$0xff] %vm740, %v1255
        %s1258 = sand.u32 %s371, 1
        %s1259 = scalar_lea.sflag [#allocation4], %s1258
        %s1260 = sand.u32 %s371, 1
        %s1261 = smul.addr %s1260, 16
        %s1262 = scalar_lea.vmem [#allocation25], %s1261
        %s1263 = sand.u32 %s399, 1
        %s1264 = scalar_lea.sflag [#allocation27], %s1263
        %s1265 = sand.u32 %s399, 1
        %s1266 = smul.addr %s1265, 16
        %s1267 = scalar_lea.vmem [#allocation26], %s1266
        // Predicated region
        $region133: #{tpu_custom_call.1} parent=75 // pred_check
          %p1268 = pneg %p381
        $region134: #{tpu_custom_call.1} parent=75 // pred_check_branch
          %1270 = sbr.rel (%p1268) target = $region136
        $region135: #{tpu_custom_call.1} parent=75 // pred_region
          %s1271 = smul.u32 2, %s50
          %s1273 = ssub.s32 256, 256
          %1274 = vsyncadd %s1259, %s1273
          %s1275 = smul.addr %s49, 2
          %s1276 = sadd.s32 %s1271, %s1275
          %s1277 = smul.addr %s1276, 128
          %s1278 = scalar_lea.hbm %s14, %s1277
          %s1279 = sshll.u32 %s1262, 4
          %s1280 = int_to_ptr.vmem [resolvable:$true] %s1279
          %1285 = dma.vmem_to_hbm [thread:$0]  %s1280, 256, %s1278, %s1259, 128, 128, 8
        $region136: #{tpu_custom_call.1} parent=75 // pred_fallthru
          _
        // Predicated region
        $region137: #{tpu_custom_call.1} parent=75 // pred_check
          %p1286 = pneg %p409
        $region138: #{tpu_custom_call.1} parent=75 // pred_check_branch
          %1288 = sbr.rel (%p1286) target = $region140
        $region139: #{tpu_custom_call.1} parent=75 // pred_region
          %s1289 = smul.u32 2, %s50
          %s1291 = ssub.s32 256, 256
          %1292 = vsyncadd %s1264, %s1291
          %s1293 = smul.addr %s49, 2
          %s1294 = sadd.s32 %s1289, %s1293
          %s1295 = smul.addr %s1294, 128
          %s1296 = scalar_lea.hbm %s15, %s1295
          %s1297 = sshll.u32 %s1267, 4
          %s1298 = int_to_ptr.vmem [resolvable:$true] %s1297
          %1303 = dma.vmem_to_hbm [thread:$0]  %s1298, 256, %s1296, %s1264, 128, 128, 8
        $region140: #{tpu_custom_call.1} parent=75 // pred_fallthru
          _
      $region76: #{tpu_custom_call.1} parent=5 // pred_fallthru
        _
      %p1304 = scmp.le.s32.totalorder 2, %s40
      // Predicated region
      $region141: #{tpu_custom_call.1} parent=5 // pred_check
        %p1305 = pneg %p1304
      $region142: #{tpu_custom_call.1} parent=5 // pred_check_branch
        %1307 = sbr.rel (%p1305) target = $region144
      $region143: #{tpu_custom_call.1} parent=5 // pred_region
        %s1308 = ssub.s32 %s40, 2
        // Predicated region
        $region145: #{tpu_custom_call.1} parent=143 // pred_check
          %p1309 = pneg %p387
        $region146: #{tpu_custom_call.1} parent=143 // pred_check_branch
          %1311 = sbr.rel (%p1309) target = $region148
        $region147: #{tpu_custom_call.1} parent=143 // pred_region
          %s1312 = sand.u32 %s372, 1
          %s1313 = scalar_lea.sflag [#allocation4], %s1312
          %s1314 = sand.u32 %s372, 1
          %s1315 = smul.addr %s1314, 16
          %s1316 = scalar_lea.vmem [#allocation25], %s1315
          %1317 = dma.done %s1313, 256
        $region148: #{tpu_custom_call.1} parent=143 // pred_fallthru
          _
        // Predicated region
        $region149: #{tpu_custom_call.1} parent=143 // pred_check
          %p1318 = pneg %p415
        $region150: #{tpu_custom_call.1} parent=143 // pred_check_branch
          %1320 = sbr.rel (%p1318) target = $region152
        $region151: #{tpu_custom_call.1} parent=143 // pred_region
          %s1321 = sand.u32 %s400, 1
          %s1322 = scalar_lea.sflag [#allocation27], %s1321
          %s1323 = sand.u32 %s400, 1
          %s1324 = smul.addr %s1323, 16
          %s1325 = scalar_lea.vmem [#allocation26], %s1324
          %1326 = dma.done %s1322, 256
        $region152: #{tpu_custom_call.1} parent=143 // pred_fallthru
          _
      $region144: #{tpu_custom_call.1} parent=5 // pred_fallthru
        _
    $region6: #{tpu_custom_call.1} parent=1 // loop_footer
      %s44 = sadd.s32 1, %s40
    $region7: #{tpu_custom_call.1} parent=1 // loop_footer_branch
      %39 = sbr.rel target = $region3
    $region8: #{tpu_custom_call.1} parent=1 // loop_exit
      _
    %1327 = vsyncpa [#allocation3], 1
    %s1328 = scalar_lea.sflag [#allocation3], 1
    %1329 = vsyncpa %s1328, 1
    %1330 = vsyncpa [#allocation6], 1
    %s1331 = scalar_lea.sflag [#allocation6], 1
    %1332 = vsyncpa %s1331, 1
    %1333 = vsyncpa [#allocation9], 1
    %1334 = vsyncpa [#allocation12], 1
    %1335 = vsyncpa [#allocation15], 1
    %1336 = vsyncpa [#allocation18], 1
    %1337 = vsyncpa [#allocation21], 1
    %1338 = vsyncpa [#allocation24], 1
    %1339 = vsyncpa [#allocation4], 1
    %s1340 = scalar_lea.sflag [#allocation4], 1
    %1341 = vsyncpa %s1340, 1
    %1342 = vsyncpa [#allocation27], 1
    %s1343 = scalar_lea.sflag [#allocation27], 1
    %1344 = vsyncpa %s1343, 1

</llo_original>
